<compile_context>
chip_gen: v7x
topology: tpu7x:2x2x1
jax: 0.10.0
libtpu: 0.0.40
codegen_flags: <defaults>
</compile_context>

<pallas_src>
import jax
import jax.numpy as jnp
from jax.experimental import pallas as pl
from jax.experimental.pallas import tpu as pltpu

# Set to jnp.bfloat16 on v6e/v7x for MXU-native matmuls + half the weight DMA.
COMPUTE_DTYPE = jnp.float32


# ----------------------------- Pallas kernel ------------------------------ #
def gru_seq_kernel(tok_ref,      # SMEM (T,)      int32 token ids (scalar prefetch)
                   gi_tab_ref,   # VMEM (V, 6Hp)  pre-projected emb @ W_ih + b_ih
                   h0_ref,       # VMEM (1, 2Hp)  initial [h_fwd | h_bwd] (padded)
                   whh_ref,      # VMEM (2Hp,6Hp) fused block hidden->hidden weights
                   bhr_ref,      # VMEM (1, 4Hp)  b_hh for r/z gates
                   bhn_ref,      # VMEM (1, 2Hp)  b_hh for n gate
                   hcat_ref):    # VMEM (T, 2Hp)  per-step [h_fwd | h_bwd] output
    T = hcat_ref.shape[0]
    H2 = hcat_ref.shape[1]                     # 2*Hp (lane-dense, multiple of 128)
    cdt = whh_ref.dtype

    # One-shot prologue (off the recurrent chain): gather the pre-projected,
    # bias-folded input contributions for every token.
    gi_rows = [gi_tab_ref[pl.ds(tok_ref[t], 1), :].astype(jnp.float32)
               for t in range(T)]                                      # T x (1, 6Hp)

    whh = whh_ref[...]
    bhr = bhr_ref[...]
    bhn = bhn_ref[...]
    h = h0_ref[...]                                                    # (1, 2Hp) f32

    # Fully unrolled recurrence (T is small); columns: [r_f r_b | z_f z_b | n_f n_b].
    rows = []
    for t in range(T):
        gi = gi_rows[t]                                                # (1, 6Hp)
        gh = jnp.dot(h.astype(cdt), whh,
                     preferred_element_type=jnp.float32)               # (1, 6Hp)
        rz = jax.nn.sigmoid(gi[:, :2 * H2] + gh[:, :2 * H2] + bhr)     # (1, 4Hp)
        r = rz[:, :H2]                                                 # (1, 2Hp)
        z = rz[:, H2:]                                                 # (1, 2Hp)
        n = jnp.tanh(gi[:, 2 * H2:] + r * (gh[:, 2 * H2:] + bhn))      # (1, 2Hp)
        h = (1.0 - z) * n + z * h                                      # both dirs at once
        rows.append(h)

    # Single lane-dense bulk store: (T, 2Hp) = (8, 128) is exactly one f32 vreg.
    hcat_ref[...] = jnp.concatenate(rows, axis=0)


# ------------------------------- wrappers ---------------------------------- #
def encoder_hst_forward_seq(tokens, hidden, kparams):
    """Runs EncoderHST.forward once per token of `tokens`, carrying `hidden`
    between steps, in ONE pallas_call / ONE kernel invocation.

    Returns (outputs, hidden): outputs (T,1,H) = per-call h_fwd + h_bwd,
    hidden (2,1,H) = final [h_fwd; h_bwd]."""
    gi_tab = kparams["gi_table"]
    whh = kparams["w_hh"]
    V = gi_tab.shape[0]
    Hp = whh.shape[0] // 2                 # padded hidden size (2Hp multiple of 128)
    H = hidden.shape[-1]                   # real hidden size
    T = int(tokens.shape[0])

    # Padded initial hidden state: real lanes from `hidden`, padded lanes 0
    # (they stay 0 under the GRU update since padded weights/biases are 0).
    h0 = jnp.zeros((1, 2 * Hp), jnp.float32)
    h0 = h0.at[0, :H].set(hidden[0, 0].astype(jnp.float32))
    h0 = h0.at[0, Hp:Hp + H].set(hidden[1, 0].astype(jnp.float32))

    const = lambda i, tok: (0, 0)          # everything resident for the single step
    hcat = pl.pallas_call(
        gru_seq_kernel,
        out_shape=jax.ShapeDtypeStruct((T, 2 * Hp), jnp.float32),
        grid_spec=pltpu.PrefetchScalarGridSpec(
            num_scalar_prefetch=1,                       # token ids -> SMEM
            grid=(1,),                                   # single invocation
            in_specs=[
                pl.BlockSpec((V, 6 * Hp), const),        # pre-projected input table
                pl.BlockSpec((1, 2 * Hp), const),        # h0
                pl.BlockSpec((2 * Hp, 6 * Hp), const),   # fused W_hh (block matrix)
                pl.BlockSpec((1, 4 * Hp), const),        # b_hh (r/z)
                pl.BlockSpec((1, 2 * Hp), const),        # b_hh (n)
            ],
            out_specs=pl.BlockSpec((T, 2 * Hp), const),
        ),
        compiler_params=pltpu.CompilerParams(
            dimension_semantics=("arbitrary",),
        ),
    )(tokens.astype(jnp.int32), gi_tab, h0,
      whh, kparams["b_hh_rz"], kparams["b_hh_n"])

    # outputs[t] = h_fwd[t] + h_bwd[t]  (seq_len == 1 per module call)
    outputs = (hcat[:, :H] + hcat[:, Hp:Hp + H]).reshape(T, 1, H)
    h_last = hcat[-1]
    h_n = jnp.stack([h_last[:H], h_last[Hp:Hp + H]], axis=0).reshape(2, 1, H)
    return outputs, h_n


def encoder_hst_forward(token, hidden, kparams):
    """Exact equivalent of EncoderHST.forward(input_data, hidden) for one token."""
    tokens = jnp.asarray(token, jnp.int32).reshape(1)
    outputs, h_n = encoder_hst_forward_seq(tokens, hidden, kparams)
    return outputs, h_n                                   # (1,1,H), (2,1,H)


# ---------------------- parameter init + repacking ------------------------- #
def init_pt_params(key, input_size, embedding_size, hidden_size):
    """PyTorch-layout parameters: weight_ih/weight_hh rows ordered [r; z; n]."""
    V, E, H = input_size, embedding_size, hidden_size
    kE, k1, k2, k3, k4 = jax.random.split(key, 5)
    scale = 1.0 / jnp.sqrt(jnp.float32(H))
    return {
        "embedding": jax.random.normal(kE, (V, E), jnp.float32),
        "w_ih_pt": jax.random.uniform(k1, (2, 3 * H, E), jnp.float32, -scale, scale),
        "w_hh_pt": jax.random.uniform(k2, (2, 3 * H, H), jnp.float32, -scale, scale),
        "b_ih_pt": jax.random.uniform(k3, (2, 3 * H), jnp.float32, -scale, scale),
        "b_hh_pt": jax.random.uniform(k4, (2, 3 * H), jnp.float32, -scale, scale),
    }


def pack_params(pt, compute_dtype=jnp.float32):
    """Repack PyTorch-layout params into the fused, lane-padded kernel layout.

    * H is padded to Hp so 2Hp is a multiple of 128 (lane-dense gate slabs).
    * gi_table[v] = emb[v] @ W_ih^T + b_ih  (input projection pre-computed,
      input biases folded) in the fused column layout [r_f r_b z_f z_b n_f n_b].
    * w_hh is the (2Hp, 6Hp) block matrix; padded rows/cols are zero."""
    emb = pt["embedding"].astype(jnp.float32)
    V, E = emb.shape
    H = pt["w_hh_pt"].shape[-1]
    Hp = max(H, ((2 * H + 127) // 128) * 128 // 2)        # 2*Hp multiple of 128

    w_ih_g = pt["w_ih_pt"].reshape(2, 3, H, E)            # [dir, gate, out, in]
    w_hh_g = pt["w_hh_pt"].reshape(2, 3, H, H)
    b_ih_g = pt["b_ih_pt"].reshape(2, 3, H)
    b_hh_g = pt["b_hh_pt"].reshape(2, 3, H)

    gi_tab = jnp.zeros((V, 6 * Hp), jnp.float32)
    whh = jnp.zeros((2 * Hp, 6 * Hp), jnp.float32)
    bhr = jnp.zeros((1, 4 * Hp), jnp.float32)
    bhn = jnp.zeros((1, 2 * Hp), jnp.float32)
    for d in range(2):
        for g in range(3):
            c0 = g * 2 * Hp + d * Hp
            gi_tab = gi_tab.at[:, c0:c0 + H].set(emb @ w_ih_g[d, g].T + b_ih_g[d, g])
            whh = whh.at[d * Hp:d * Hp + H, c0:c0 + H].set(w_hh_g[d, g].T)
            if g < 2:
                bhr = bhr.at[0, c0:c0 + H].set(b_hh_g[d, g])
            else:
                bhn = bhn.at[0, d * Hp:d * Hp + H].set(b_hh_g[d, g])

    return {
        "gi_table": gi_tab.astype(compute_dtype),
        "w_hh": whh.astype(compute_dtype),
        "b_hh_rz": bhr,                                    # biases stay f32
        "b_hh_n": bhn,
    }


# ----------------------- pure-JAX reference (checking) --------------------- #
def reference_forward_seq(tokens, hidden, pt):
    """Python loop of the PyTorch module's forward(), PyTorch GRU-cell math."""
    emb = pt["embedding"]
    H = hidden.shape[-1]
    h = [hidden[0], hidden[1]]
    outs = []
    for i in range(tokens.shape[0]):
        x = emb[tokens[i]].reshape(1, -1)
        new_h = []
        for d in range(2):
            gi = x @ pt["w_ih_pt"][d].T + pt["b_ih_pt"][d]
            gh = h[d] @ pt["w_hh_pt"][d].T + pt["b_hh_pt"][d]
            r = jax.nn.sigmoid(gi[:, :H] + gh[:, :H])
            z = jax.nn.sigmoid(gi[:, H:2 * H] + gh[:, H:2 * H])
            n = jnp.tanh(gi[:, 2 * H:] + r * gh[:, 2 * H:])
            new_h.append((1.0 - z) * n + z * h[d])
        h = new_h
        outs.append(h[0] + h[1])
    return jnp.stack(outs, axis=0), jnp.stack(h, axis=0)   # (T,1,H), (2,1,H)


# ---------------------------------- main ----------------------------------- #
if __name__ == "__main__":
    input_size = 16       # vocab
    embedding_size = 32
    hidden_size = 32
    seq_len = 8

    key = jax.random.PRNGKey(0)
    k_params, k_hidden, k_tok = jax.random.split(key, 3)

    pt_params = init_pt_params(k_params, input_size, embedding_size, hidden_size)
    kparams = pack_params(pt_params, COMPUTE_DTYPE)

    tokens = jax.random.randint(k_tok, (seq_len,), 0, input_size, jnp.int32)
    hidden = jax.random.normal(k_hidden, (2, 1, hidden_size), jnp.float32)    # h0

    # Whole sequence in one pallas_call / one kernel invocation.
    outputs, h_n = encoder_hst_forward_seq(tokens, hidden, kparams)
    outputs = jax.block_until_ready(outputs)
    h_n = jax.block_until_ready(h_n)
    assert outputs.shape == (seq_len, 1, hidden_size)
    assert h_n.shape == (2, 1, hidden_size)

    ref_out, ref_h = reference_forward_seq(tokens, hidden, pt_params)
    assert jnp.allclose(outputs, ref_out, atol=1e-4, rtol=1e-4)
    assert jnp.allclose(h_n, ref_h, atol=1e-4, rtol=1e-4)

    # Single-token call (exact module-forward equivalent).
    out1, h1 = encoder_hst_forward(tokens[0], hidden, kparams)
    out1 = jax.block_until_ready(out1)
    ref_out1, ref_h1 = reference_forward_seq(tokens[:1], hidden, pt_params)
    assert out1.shape == (1, 1, hidden_size) and h1.shape == (2, 1, hidden_size)
    assert jnp.allclose(out1, ref_out1, atol=1e-4, rtol=1e-4)
    assert jnp.allclose(h1, ref_h1, atol=1e-4, rtol=1e-4)

    print("KERNEL_OK")
</pallas_src>

<mosaic_0001>
module attributes {stable_mosaic.version = 11 : i64} {
  func.func @gru_seq_kernel(%arg0: i32, %arg1: memref<8xi32, #tpu.memory_space<smem>>, %arg2: memref<16x384xf32, #tpu.memory_space<vmem>>, %arg3: memref<1x128xf32, #tpu.memory_space<vmem>>, %arg4: memref<128x384xf32, #tpu.memory_space<vmem>>, %arg5: memref<1x256xf32, #tpu.memory_space<vmem>>, %arg6: memref<1x128xf32, #tpu.memory_space<vmem>>, %arg7: memref<8x128xf32, #tpu.memory_space<vmem>>) attributes {dimension_semantics = [#tpu.dimension_semantics<arbitrary>], iteration_bounds = array<i64: 1>, scalar_prefetch = 1 : i64, scratch_operands = 0 : i64, tpu.core_type = #tpu.core_type<tc>, window_params = [{pipeline_mode = #tpu.pipeline_mode<synchronous>, transform_indices = @transform_0, window_bounds = array<i64: 16, 384>}, {pipeline_mode = #tpu.pipeline_mode<synchronous>, transform_indices = @transform_1, window_bounds = array<i64: 1, 128>}, {pipeline_mode = #tpu.pipeline_mode<synchronous>, transform_indices = @transform_2, window_bounds = array<i64: 128, 384>}, {pipeline_mode = #tpu.pipeline_mode<synchronous>, transform_indices = @transform_3, window_bounds = array<i64: 1, 256>}, {pipeline_mode = #tpu.pipeline_mode<synchronous>, transform_indices = @transform_4, window_bounds = array<i64: 1, 128>}, {pipeline_mode = #tpu.pipeline_mode<synchronous>, transform_indices = @transform_5, window_bounds = array<i64: 8, 128>}]} {
    %c0 = arith.constant 0 : index
    %0 = memref.load %arg1[%c0] : memref<8xi32, #tpu.memory_space<smem>>
    %1 = arith.index_cast %0 : i32 to index
    %c0_0 = arith.constant 0 : index
    %2 = vector.load %arg2[%1, %c0_0] : memref<16x384xf32, #tpu.memory_space<vmem>>, vector<1x384xf32>
    %c1 = arith.constant 1 : index
    %3 = memref.load %arg1[%c1] : memref<8xi32, #tpu.memory_space<smem>>
    %4 = arith.index_cast %3 : i32 to index
    %c0_1 = arith.constant 0 : index
    %5 = vector.load %arg2[%4, %c0_1] : memref<16x384xf32, #tpu.memory_space<vmem>>, vector<1x384xf32>
    %c2 = arith.constant 2 : index
    %6 = memref.load %arg1[%c2] : memref<8xi32, #tpu.memory_space<smem>>
    %7 = arith.index_cast %6 : i32 to index
    %c0_2 = arith.constant 0 : index
    %8 = vector.load %arg2[%7, %c0_2] : memref<16x384xf32, #tpu.memory_space<vmem>>, vector<1x384xf32>
    %c3 = arith.constant 3 : index
    %9 = memref.load %arg1[%c3] : memref<8xi32, #tpu.memory_space<smem>>
    %10 = arith.index_cast %9 : i32 to index
    %c0_3 = arith.constant 0 : index
    %11 = vector.load %arg2[%10, %c0_3] : memref<16x384xf32, #tpu.memory_space<vmem>>, vector<1x384xf32>
    %c4 = arith.constant 4 : index
    %12 = memref.load %arg1[%c4] : memref<8xi32, #tpu.memory_space<smem>>
    %13 = arith.index_cast %12 : i32 to index
    %c0_4 = arith.constant 0 : index
    %14 = vector.load %arg2[%13, %c0_4] : memref<16x384xf32, #tpu.memory_space<vmem>>, vector<1x384xf32>
    %c5 = arith.constant 5 : index
    %15 = memref.load %arg1[%c5] : memref<8xi32, #tpu.memory_space<smem>>
    %16 = arith.index_cast %15 : i32 to index
    %c0_5 = arith.constant 0 : index
    %17 = vector.load %arg2[%16, %c0_5] : memref<16x384xf32, #tpu.memory_space<vmem>>, vector<1x384xf32>
    %c6 = arith.constant 6 : index
    %18 = memref.load %arg1[%c6] : memref<8xi32, #tpu.memory_space<smem>>
    %19 = arith.index_cast %18 : i32 to index
    %c0_6 = arith.constant 0 : index
    %20 = vector.load %arg2[%19, %c0_6] : memref<16x384xf32, #tpu.memory_space<vmem>>, vector<1x384xf32>
    %c7 = arith.constant 7 : index
    %21 = memref.load %arg1[%c7] : memref<8xi32, #tpu.memory_space<smem>>
    %22 = arith.index_cast %21 : i32 to index
    %c0_7 = arith.constant 0 : index
    %23 = vector.load %arg2[%22, %c0_7] : memref<16x384xf32, #tpu.memory_space<vmem>>, vector<1x384xf32>
    %c0_8 = arith.constant 0 : index
    %c0_9 = arith.constant 0 : index
    %24 = vector.load %arg4[%c0_8, %c0_9] : memref<128x384xf32, #tpu.memory_space<vmem>>, vector<128x384xf32>
    %c0_10 = arith.constant 0 : index
    %c0_11 = arith.constant 0 : index
    %25 = vector.load %arg5[%c0_10, %c0_11] : memref<1x256xf32, #tpu.memory_space<vmem>>, vector<1x256xf32>
    %c0_12 = arith.constant 0 : index
    %c0_13 = arith.constant 0 : index
    %26 = vector.load %arg6[%c0_12, %c0_13] : memref<1x128xf32, #tpu.memory_space<vmem>>, vector<1x128xf32>
    %c0_14 = arith.constant 0 : index
    %c0_15 = arith.constant 0 : index
    %27 = vector.load %arg3[%c0_14, %c0_15] : memref<1x128xf32, #tpu.memory_space<vmem>>, vector<1x128xf32>
    %cst = arith.constant dense<0.000000e+00> : vector<1x384xf32>
    %28 = tpu.matmul %27, %24, %cst {dimension_numbers = #tpu.dot_dimension_numbers<[1], [0], [0], [1], [0, 0, 1, 1], [], []>} : vector<1x128xf32>, vector<128x384xf32>, vector<1x384xf32> -> vector<1x384xf32>
    %29 = vector.extract_strided_slice %2 {offsets = [0, 0], sizes = [1, 256], strides = [1, 1]} : vector<1x384xf32> to vector<1x256xf32>
    %30 = vector.extract_strided_slice %28 {offsets = [0, 0], sizes = [1, 256], strides = [1, 1]} : vector<1x384xf32> to vector<1x256xf32>
    %31 = arith.addf %29, %30 : vector<1x256xf32>
    %32 = arith.addf %31, %25 : vector<1x256xf32>
    %33 = arith.negf %32 : vector<1x256xf32>
    %34 = math.exp %33 : vector<1x256xf32>
    %cst_16 = arith.constant 1.000000e+00 : f32
    %35 = vector.broadcast %cst_16 : f32 to vector<1x256xf32>
    %36 = arith.addf %35, %34 : vector<1x256xf32>
    %37 = arith.divf %35, %36 : vector<1x256xf32>
    %38 = vector.extract_strided_slice %37 {offsets = [0, 0], sizes = [1, 128], strides = [1, 1]} : vector<1x256xf32> to vector<1x128xf32>
    %39 = vector.extract_strided_slice %37 {offsets = [0, 128], sizes = [1, 128], strides = [1, 1]} : vector<1x256xf32> to vector<1x128xf32>
    %40 = vector.extract_strided_slice %2 {offsets = [0, 256], sizes = [1, 128], strides = [1, 1]} : vector<1x384xf32> to vector<1x128xf32>
    %41 = vector.extract_strided_slice %28 {offsets = [0, 256], sizes = [1, 128], strides = [1, 1]} : vector<1x384xf32> to vector<1x128xf32>
    %42 = arith.addf %41, %26 : vector<1x128xf32>
    %43 = arith.mulf %38, %42 : vector<1x128xf32>
    %44 = arith.addf %40, %43 : vector<1x128xf32>
    %45 = math.tanh %44 : vector<1x128xf32>
    %cst_17 = arith.constant 1.000000e+00 : f32
    %46 = vector.broadcast %cst_17 : f32 to vector<1x128xf32>
    %47 = arith.subf %46, %39 : vector<1x128xf32>
    %48 = arith.mulf %47, %45 : vector<1x128xf32>
    %49 = arith.mulf %39, %27 : vector<1x128xf32>
    %50 = arith.addf %48, %49 : vector<1x128xf32>
    %cst_18 = arith.constant dense<0.000000e+00> : vector<1x384xf32>
    %51 = tpu.matmul %50, %24, %cst_18 {dimension_numbers = #tpu.dot_dimension_numbers<[1], [0], [0], [1], [0, 0, 1, 1], [], []>} : vector<1x128xf32>, vector<128x384xf32>, vector<1x384xf32> -> vector<1x384xf32>
    %52 = vector.extract_strided_slice %5 {offsets = [0, 0], sizes = [1, 256], strides = [1, 1]} : vector<1x384xf32> to vector<1x256xf32>
    %53 = vector.extract_strided_slice %51 {offsets = [0, 0], sizes = [1, 256], strides = [1, 1]} : vector<1x384xf32> to vector<1x256xf32>
    %54 = arith.addf %52, %53 : vector<1x256xf32>
    %55 = arith.addf %54, %25 : vector<1x256xf32>
    %56 = arith.negf %55 : vector<1x256xf32>
    %57 = math.exp %56 : vector<1x256xf32>
    %cst_19 = arith.constant 1.000000e+00 : f32
    %58 = vector.broadcast %cst_19 : f32 to vector<1x256xf32>
    %59 = arith.addf %58, %57 : vector<1x256xf32>
    %60 = arith.divf %58, %59 : vector<1x256xf32>
    %61 = vector.extract_strided_slice %60 {offsets = [0, 0], sizes = [1, 128], strides = [1, 1]} : vector<1x256xf32> to vector<1x128xf32>
    %62 = vector.extract_strided_slice %60 {offsets = [0, 128], sizes = [1, 128], strides = [1, 1]} : vector<1x256xf32> to vector<1x128xf32>
    %63 = vector.extract_strided_slice %5 {offsets = [0, 256], sizes = [1, 128], strides = [1, 1]} : vector<1x384xf32> to vector<1x128xf32>
    %64 = vector.extract_strided_slice %51 {offsets = [0, 256], sizes = [1, 128], strides = [1, 1]} : vector<1x384xf32> to vector<1x128xf32>
    %65 = arith.addf %64, %26 : vector<1x128xf32>
    %66 = arith.mulf %61, %65 : vector<1x128xf32>
    %67 = arith.addf %63, %66 : vector<1x128xf32>
    %68 = math.tanh %67 : vector<1x128xf32>
    %cst_20 = arith.constant 1.000000e+00 : f32
    %69 = vector.broadcast %cst_20 : f32 to vector<1x128xf32>
    %70 = arith.subf %69, %62 : vector<1x128xf32>
    %71 = arith.mulf %70, %68 : vector<1x128xf32>
    %72 = arith.mulf %62, %50 : vector<1x128xf32>
    %73 = arith.addf %71, %72 : vector<1x128xf32>
    %cst_21 = arith.constant dense<0.000000e+00> : vector<1x384xf32>
    %74 = tpu.matmul %73, %24, %cst_21 {dimension_numbers = #tpu.dot_dimension_numbers<[1], [0], [0], [1], [0, 0, 1, 1], [], []>} : vector<1x128xf32>, vector<128x384xf32>, vector<1x384xf32> -> vector<1x384xf32>
    %75 = vector.extract_strided_slice %8 {offsets = [0, 0], sizes = [1, 256], strides = [1, 1]} : vector<1x384xf32> to vector<1x256xf32>
    %76 = vector.extract_strided_slice %74 {offsets = [0, 0], sizes = [1, 256], strides = [1, 1]} : vector<1x384xf32> to vector<1x256xf32>
    %77 = arith.addf %75, %76 : vector<1x256xf32>
    %78 = arith.addf %77, %25 : vector<1x256xf32>
    %79 = arith.negf %78 : vector<1x256xf32>
    %80 = math.exp %79 : vector<1x256xf32>
    %cst_22 = arith.constant 1.000000e+00 : f32
    %81 = vector.broadcast %cst_22 : f32 to vector<1x256xf32>
    %82 = arith.addf %81, %80 : vector<1x256xf32>
    %83 = arith.divf %81, %82 : vector<1x256xf32>
    %84 = vector.extract_strided_slice %83 {offsets = [0, 0], sizes = [1, 128], strides = [1, 1]} : vector<1x256xf32> to vector<1x128xf32>
    %85 = vector.extract_strided_slice %83 {offsets = [0, 128], sizes = [1, 128], strides = [1, 1]} : vector<1x256xf32> to vector<1x128xf32>
    %86 = vector.extract_strided_slice %8 {offsets = [0, 256], sizes = [1, 128], strides = [1, 1]} : vector<1x384xf32> to vector<1x128xf32>
    %87 = vector.extract_strided_slice %74 {offsets = [0, 256], sizes = [1, 128], strides = [1, 1]} : vector<1x384xf32> to vector<1x128xf32>
    %88 = arith.addf %87, %26 : vector<1x128xf32>
    %89 = arith.mulf %84, %88 : vector<1x128xf32>
    %90 = arith.addf %86, %89 : vector<1x128xf32>
    %91 = math.tanh %90 : vector<1x128xf32>
    %cst_23 = arith.constant 1.000000e+00 : f32
    %92 = vector.broadcast %cst_23 : f32 to vector<1x128xf32>
    %93 = arith.subf %92, %85 : vector<1x128xf32>
    %94 = arith.mulf %93, %91 : vector<1x128xf32>
    %95 = arith.mulf %85, %73 : vector<1x128xf32>
    %96 = arith.addf %94, %95 : vector<1x128xf32>
    %cst_24 = arith.constant dense<0.000000e+00> : vector<1x384xf32>
    %97 = tpu.matmul %96, %24, %cst_24 {dimension_numbers = #tpu.dot_dimension_numbers<[1], [0], [0], [1], [0, 0, 1, 1], [], []>} : vector<1x128xf32>, vector<128x384xf32>, vector<1x384xf32> -> vector<1x384xf32>
    %98 = vector.extract_strided_slice %11 {offsets = [0, 0], sizes = [1, 256], strides = [1, 1]} : vector<1x384xf32> to vector<1x256xf32>
    %99 = vector.extract_strided_slice %97 {offsets = [0, 0], sizes = [1, 256], strides = [1, 1]} : vector<1x384xf32> to vector<1x256xf32>
    %100 = arith.addf %98, %99 : vector<1x256xf32>
    %101 = arith.addf %100, %25 : vector<1x256xf32>
    %102 = arith.negf %101 : vector<1x256xf32>
    %103 = math.exp %102 : vector<1x256xf32>
    %cst_25 = arith.constant 1.000000e+00 : f32
    %104 = vector.broadcast %cst_25 : f32 to vector<1x256xf32>
    %105 = arith.addf %104, %103 : vector<1x256xf32>
    %106 = arith.divf %104, %105 : vector<1x256xf32>
    %107 = vector.extract_strided_slice %106 {offsets = [0, 0], sizes = [1, 128], strides = [1, 1]} : vector<1x256xf32> to vector<1x128xf32>
    %108 = vector.extract_strided_slice %106 {offsets = [0, 128], sizes = [1, 128], strides = [1, 1]} : vector<1x256xf32> to vector<1x128xf32>
    %109 = vector.extract_strided_slice %11 {offsets = [0, 256], sizes = [1, 128], strides = [1, 1]} : vector<1x384xf32> to vector<1x128xf32>
    %110 = vector.extract_strided_slice %97 {offsets = [0, 256], sizes = [1, 128], strides = [1, 1]} : vector<1x384xf32> to vector<1x128xf32>
    %111 = arith.addf %110, %26 : vector<1x128xf32>
    %112 = arith.mulf %107, %111 : vector<1x128xf32>
    %113 = arith.addf %109, %112 : vector<1x128xf32>
    %114 = math.tanh %113 : vector<1x128xf32>
    %cst_26 = arith.constant 1.000000e+00 : f32
    %115 = vector.broadcast %cst_26 : f32 to vector<1x128xf32>
    %116 = arith.subf %115, %108 : vector<1x128xf32>
    %117 = arith.mulf %116, %114 : vector<1x128xf32>
    %118 = arith.mulf %108, %96 : vector<1x128xf32>
    %119 = arith.addf %117, %118 : vector<1x128xf32>
    %cst_27 = arith.constant dense<0.000000e+00> : vector<1x384xf32>
    %120 = tpu.matmul %119, %24, %cst_27 {dimension_numbers = #tpu.dot_dimension_numbers<[1], [0], [0], [1], [0, 0, 1, 1], [], []>} : vector<1x128xf32>, vector<128x384xf32>, vector<1x384xf32> -> vector<1x384xf32>
    %121 = vector.extract_strided_slice %14 {offsets = [0, 0], sizes = [1, 256], strides = [1, 1]} : vector<1x384xf32> to vector<1x256xf32>
    %122 = vector.extract_strided_slice %120 {offsets = [0, 0], sizes = [1, 256], strides = [1, 1]} : vector<1x384xf32> to vector<1x256xf32>
    %123 = arith.addf %121, %122 : vector<1x256xf32>
    %124 = arith.addf %123, %25 : vector<1x256xf32>
    %125 = arith.negf %124 : vector<1x256xf32>
    %126 = math.exp %125 : vector<1x256xf32>
    %cst_28 = arith.constant 1.000000e+00 : f32
    %127 = vector.broadcast %cst_28 : f32 to vector<1x256xf32>
    %128 = arith.addf %127, %126 : vector<1x256xf32>
    %129 = arith.divf %127, %128 : vector<1x256xf32>
    %130 = vector.extract_strided_slice %129 {offsets = [0, 0], sizes = [1, 128], strides = [1, 1]} : vector<1x256xf32> to vector<1x128xf32>
    %131 = vector.extract_strided_slice %129 {offsets = [0, 128], sizes = [1, 128], strides = [1, 1]} : vector<1x256xf32> to vector<1x128xf32>
    %132 = vector.extract_strided_slice %14 {offsets = [0, 256], sizes = [1, 128], strides = [1, 1]} : vector<1x384xf32> to vector<1x128xf32>
    %133 = vector.extract_strided_slice %120 {offsets = [0, 256], sizes = [1, 128], strides = [1, 1]} : vector<1x384xf32> to vector<1x128xf32>
    %134 = arith.addf %133, %26 : vector<1x128xf32>
    %135 = arith.mulf %130, %134 : vector<1x128xf32>
    %136 = arith.addf %132, %135 : vector<1x128xf32>
    %137 = math.tanh %136 : vector<1x128xf32>
    %cst_29 = arith.constant 1.000000e+00 : f32
    %138 = vector.broadcast %cst_29 : f32 to vector<1x128xf32>
    %139 = arith.subf %138, %131 : vector<1x128xf32>
    %140 = arith.mulf %139, %137 : vector<1x128xf32>
    %141 = arith.mulf %131, %119 : vector<1x128xf32>
    %142 = arith.addf %140, %141 : vector<1x128xf32>
    %cst_30 = arith.constant dense<0.000000e+00> : vector<1x384xf32>
    %143 = tpu.matmul %142, %24, %cst_30 {dimension_numbers = #tpu.dot_dimension_numbers<[1], [0], [0], [1], [0, 0, 1, 1], [], []>} : vector<1x128xf32>, vector<128x384xf32>, vector<1x384xf32> -> vector<1x384xf32>
    %144 = vector.extract_strided_slice %17 {offsets = [0, 0], sizes = [1, 256], strides = [1, 1]} : vector<1x384xf32> to vector<1x256xf32>
    %145 = vector.extract_strided_slice %143 {offsets = [0, 0], sizes = [1, 256], strides = [1, 1]} : vector<1x384xf32> to vector<1x256xf32>
    %146 = arith.addf %144, %145 : vector<1x256xf32>
    %147 = arith.addf %146, %25 : vector<1x256xf32>
    %148 = arith.negf %147 : vector<1x256xf32>
    %149 = math.exp %148 : vector<1x256xf32>
    %cst_31 = arith.constant 1.000000e+00 : f32
    %150 = vector.broadcast %cst_31 : f32 to vector<1x256xf32>
    %151 = arith.addf %150, %149 : vector<1x256xf32>
    %152 = arith.divf %150, %151 : vector<1x256xf32>
    %153 = vector.extract_strided_slice %152 {offsets = [0, 0], sizes = [1, 128], strides = [1, 1]} : vector<1x256xf32> to vector<1x128xf32>
    %154 = vector.extract_strided_slice %152 {offsets = [0, 128], sizes = [1, 128], strides = [1, 1]} : vector<1x256xf32> to vector<1x128xf32>
    %155 = vector.extract_strided_slice %17 {offsets = [0, 256], sizes = [1, 128], strides = [1, 1]} : vector<1x384xf32> to vector<1x128xf32>
    %156 = vector.extract_strided_slice %143 {offsets = [0, 256], sizes = [1, 128], strides = [1, 1]} : vector<1x384xf32> to vector<1x128xf32>
    %157 = arith.addf %156, %26 : vector<1x128xf32>
    %158 = arith.mulf %153, %157 : vector<1x128xf32>
    %159 = arith.addf %155, %158 : vector<1x128xf32>
    %160 = math.tanh %159 : vector<1x128xf32>
    %cst_32 = arith.constant 1.000000e+00 : f32
    %161 = vector.broadcast %cst_32 : f32 to vector<1x128xf32>
    %162 = arith.subf %161, %154 : vector<1x128xf32>
    %163 = arith.mulf %162, %160 : vector<1x128xf32>
    %164 = arith.mulf %154, %142 : vector<1x128xf32>
    %165 = arith.addf %163, %164 : vector<1x128xf32>
    %cst_33 = arith.constant dense<0.000000e+00> : vector<1x384xf32>
    %166 = tpu.matmul %165, %24, %cst_33 {dimension_numbers = #tpu.dot_dimension_numbers<[1], [0], [0], [1], [0, 0, 1, 1], [], []>} : vector<1x128xf32>, vector<128x384xf32>, vector<1x384xf32> -> vector<1x384xf32>
    %167 = vector.extract_strided_slice %20 {offsets = [0, 0], sizes = [1, 256], strides = [1, 1]} : vector<1x384xf32> to vector<1x256xf32>
    %168 = vector.extract_strided_slice %166 {offsets = [0, 0], sizes = [1, 256], strides = [1, 1]} : vector<1x384xf32> to vector<1x256xf32>
    %169 = arith.addf %167, %168 : vector<1x256xf32>
    %170 = arith.addf %169, %25 : vector<1x256xf32>
    %171 = arith.negf %170 : vector<1x256xf32>
    %172 = math.exp %171 : vector<1x256xf32>
    %cst_34 = arith.constant 1.000000e+00 : f32
    %173 = vector.broadcast %cst_34 : f32 to vector<1x256xf32>
    %174 = arith.addf %173, %172 : vector<1x256xf32>
    %175 = arith.divf %173, %174 : vector<1x256xf32>
    %176 = vector.extract_strided_slice %175 {offsets = [0, 0], sizes = [1, 128], strides = [1, 1]} : vector<1x256xf32> to vector<1x128xf32>
    %177 = vector.extract_strided_slice %175 {offsets = [0, 128], sizes = [1, 128], strides = [1, 1]} : vector<1x256xf32> to vector<1x128xf32>
    %178 = vector.extract_strided_slice %20 {offsets = [0, 256], sizes = [1, 128], strides = [1, 1]} : vector<1x384xf32> to vector<1x128xf32>
    %179 = vector.extract_strided_slice %166 {offsets = [0, 256], sizes = [1, 128], strides = [1, 1]} : vector<1x384xf32> to vector<1x128xf32>
    %180 = arith.addf %179, %26 : vector<1x128xf32>
    %181 = arith.mulf %176, %180 : vector<1x128xf32>
    %182 = arith.addf %178, %181 : vector<1x128xf32>
    %183 = math.tanh %182 : vector<1x128xf32>
    %cst_35 = arith.constant 1.000000e+00 : f32
    %184 = vector.broadcast %cst_35 : f32 to vector<1x128xf32>
    %185 = arith.subf %184, %177 : vector<1x128xf32>
    %186 = arith.mulf %185, %183 : vector<1x128xf32>
    %187 = arith.mulf %177, %165 : vector<1x128xf32>
    %188 = arith.addf %186, %187 : vector<1x128xf32>
    %cst_36 = arith.constant dense<0.000000e+00> : vector<1x384xf32>
    %189 = tpu.matmul %188, %24, %cst_36 {dimension_numbers = #tpu.dot_dimension_numbers<[1], [0], [0], [1], [0, 0, 1, 1], [], []>} : vector<1x128xf32>, vector<128x384xf32>, vector<1x384xf32> -> vector<1x384xf32>
    %190 = vector.extract_strided_slice %23 {offsets = [0, 0], sizes = [1, 256], strides = [1, 1]} : vector<1x384xf32> to vector<1x256xf32>
    %191 = vector.extract_strided_slice %189 {offsets = [0, 0], sizes = [1, 256], strides = [1, 1]} : vector<1x384xf32> to vector<1x256xf32>
    %192 = arith.addf %190, %191 : vector<1x256xf32>
    %193 = arith.addf %192, %25 : vector<1x256xf32>
    %194 = arith.negf %193 : vector<1x256xf32>
    %195 = math.exp %194 : vector<1x256xf32>
    %cst_37 = arith.constant 1.000000e+00 : f32
    %196 = vector.broadcast %cst_37 : f32 to vector<1x256xf32>
    %197 = arith.addf %196, %195 : vector<1x256xf32>
    %198 = arith.divf %196, %197 : vector<1x256xf32>
    %199 = vector.extract_strided_slice %198 {offsets = [0, 0], sizes = [1, 128], strides = [1, 1]} : vector<1x256xf32> to vector<1x128xf32>
    %200 = vector.extract_strided_slice %198 {offsets = [0, 128], sizes = [1, 128], strides = [1, 1]} : vector<1x256xf32> to vector<1x128xf32>
    %201 = vector.extract_strided_slice %23 {offsets = [0, 256], sizes = [1, 128], strides = [1, 1]} : vector<1x384xf32> to vector<1x128xf32>
    %202 = vector.extract_strided_slice %189 {offsets = [0, 256], sizes = [1, 128], strides = [1, 1]} : vector<1x384xf32> to vector<1x128xf32>
    %203 = arith.addf %202, %26 : vector<1x128xf32>
    %204 = arith.mulf %199, %203 : vector<1x128xf32>
    %205 = arith.addf %201, %204 : vector<1x128xf32>
    %206 = math.tanh %205 : vector<1x128xf32>
    %cst_38 = arith.constant 1.000000e+00 : f32
    %207 = vector.broadcast %cst_38 : f32 to vector<1x128xf32>
    %208 = arith.subf %207, %200 : vector<1x128xf32>
    %209 = arith.mulf %208, %206 : vector<1x128xf32>
    %210 = arith.mulf %200, %188 : vector<1x128xf32>
    %211 = arith.addf %209, %210 : vector<1x128xf32>
    %212 = tpu.concatenate %50, %73, %96, %119, %142, %165, %188, %211 in 0 : vector<1x128xf32>, vector<1x128xf32>, vector<1x128xf32>, vector<1x128xf32>, vector<1x128xf32>, vector<1x128xf32>, vector<1x128xf32>, vector<1x128xf32> -> vector<8x128xf32>
    %c0_39 = arith.constant 0 : index
    %c0_40 = arith.constant 0 : index
    %213 = vector.load %arg7[%c0_39, %c0_40] : memref<8x128xf32, #tpu.memory_space<vmem>>, vector<8x128xf32>
    tpu.vector_store %arg7[%c0_39, %c0_40], %212 {strides = array<i32>} : memref<8x128xf32, #tpu.memory_space<vmem>>, vector<8x128xf32>,
    return
  }
  func.func @transform_0(%arg0: i32, %arg1: memref<8xi32, #tpu.memory_space<smem>>) -> (i32, i32) {
    %c0_i32 = arith.constant 0 : i32
    %c0_i32_0 = arith.constant 0 : i32
    %c0_i32_1 = arith.constant 0 : i32
    return %c0_i32, %c0_i32_0 : i32, i32
  }
  func.func @transform_1(%arg0: i32, %arg1: memref<8xi32, #tpu.memory_space<smem>>) -> (i32, i32) {
    %c0_i32 = arith.constant 0 : i32
    %c0_i32_0 = arith.constant 0 : i32
    %c0_i32_1 = arith.constant 0 : i32
    return %c0_i32, %c0_i32_0 : i32, i32
  }
  func.func @transform_2(%arg0: i32, %arg1: memref<8xi32, #tpu.memory_space<smem>>) -> (i32, i32) {
    %c0_i32 = arith.constant 0 : i32
    %c0_i32_0 = arith.constant 0 : i32
    %c0_i32_1 = arith.constant 0 : i32
    return %c0_i32, %c0_i32_0 : i32, i32
  }
  func.func @transform_3(%arg0: i32, %arg1: memref<8xi32, #tpu.memory_space<smem>>) -> (i32, i32) {
    %c0_i32 = arith.constant 0 : i32
    %c0_i32_0 = arith.constant 0 : i32
    %c0_i32_1 = arith.constant 0 : i32
    return %c0_i32, %c0_i32_0 : i32, i32
  }
  func.func @transform_4(%arg0: i32, %arg1: memref<8xi32, #tpu.memory_space<smem>>) -> (i32, i32) {
    %c0_i32 = arith.constant 0 : i32
    %c0_i32_0 = arith.constant 0 : i32
    %c0_i32_1 = arith.constant 0 : i32
    return %c0_i32, %c0_i32_0 : i32, i32
  }
  func.func @transform_5(%arg0: i32, %arg1: memref<8xi32, #tpu.memory_space<smem>>) -> (i32, i32) {
    %c0_i32 = arith.constant 0 : i32
    %c0_i32_0 = arith.constant 0 : i32
    %c0_i32_1 = arith.constant 0 : i32
    return %c0_i32, %c0_i32_0 : i32, i32
  }
}

</mosaic_0001>

<llo_original>
// kernel: tpu_custom_call.1
$region0: #{tpu_custom_call.1}
  #allocation0 [shape = 'u32[]', space=smem, size = 0x4, offset = 0x4, fixed_abs, tag = 'smem constant byte address 0x4 - core index']
  #allocation1 [shape = 'u32[144,128]{1,0:T(1,128)}', space=vmem, size = 0x12000, scoped, tag = 'internal scratch']
  #allocation2 [shape = 's32[1]{0}', space=sflag, size = 0x4, scoped, tag = 'scoped memory for tpu_custom_call.1']
  #allocation3 [shape = 'u8[512]{0}', space=smem, size = 0x200, scoped, tag = 'prefetched SMEM operand 0']
  %s0 = inlined_call_operand.hbm [shape: s32[8], index: 0, kind: input, shape index: {}]
  %s1 = inlined_call_operand.hbm [shape: f32[16,384], index: 1, kind: input, shape index: {}]
  %s2 = inlined_call_operand.vmem [shape: f32[1,128], index: 2, kind: input, shape index: {}]
  %s3 = inlined_call_operand.hbm [shape: f32[128,384], index: 3, kind: input, shape index: {}]
  %s4 = inlined_call_operand.vmem [shape: f32[1,256], index: 4, kind: input, shape index: {}]
  %s5 = inlined_call_operand.vmem [shape: f32[1,128], index: 5, kind: input, shape index: {}]
  %s6 = inlined_call_operand.hbm [shape: f32[8,128], index: 6, kind: output, shape index: {}]
  %s7 = sld [smem:[#allocation0]]
  $region38: #{tpu_custom_call.1} parent=0
    _
  %s9 = ssub.s32 1, %s7
  %s10 = scalar_select 0, %s9, %s7
  %12 = dma.hbm_to_smem %s0, 16, [#allocation3], [#allocation2]
  %13 = dma.done [#allocation2], 16
  %14 = sfence
  $region1: #{tpu_custom_call.1} parent=0
    #allocation4 [shape = 'u8[24576]{0}', space=vmem, size = 0x6000, scoped, tag = 'input window, operand 1, single buffered']
    #allocation5 [shape = 's32[1]{0}', space=sflag, size = 0x4, scoped, tag = 'scoped memory for tpu_custom_call.1']
    #allocation6 [shape = 's32[1]{0}', space=sflag, size = 0x4, scoped, tag = 'scoped memory for tpu_custom_call.1']
    #allocation7 [shape = 'u8[196608]{0}', space=vmem, size = 0x30000, scoped, tag = 'input window, operand 3, single buffered']
    #allocation8 [shape = 's32[1]{0}', space=sflag, size = 0x4, scoped, tag = 'scoped memory for tpu_custom_call.1']
    #allocation9 [shape = 'u8[4096]{0}', space=vmem, size = 0x1000, scoped, tag = 'output window, operand 0, single buffered']
    %15 = vsyncpa [#allocation5], 0
    %16 = vsyncpa [#allocation8], 0
    %17 = vsyncpa [#allocation6], 0
    // Predicated region
    $region2: #{tpu_custom_call.1} parent=1 // pred_check
      _
    $region3: #{tpu_custom_call.1} parent=1 // pred_check_branch
      %19 = sbr.rel (0) target = $region5
    $region4: #{tpu_custom_call.1} parent=1 // pred_region
      %s21 = ssub.s32 768, 768
      %22 = vsyncadd [#allocation5], %s21
      %s23 = sshll.u32 [#allocation4], 4
      %s24 = int_to_ptr.vmem [resolvable:$true] %s23
      %29 = dma.hbm_to_vmem [thread:$0]  %s1, 768, %s24, [#allocation5], 384, 384, 24
    $region5: #{tpu_custom_call.1} parent=1 // pred_fallthru
      _
    // Predicated region
    $region6: #{tpu_custom_call.1} parent=1 // pred_check
      _
    $region7: #{tpu_custom_call.1} parent=1 // pred_check_branch
      %31 = sbr.rel (0) target = $region9
    $region8: #{tpu_custom_call.1} parent=1 // pred_region
      _
    $region9: #{tpu_custom_call.1} parent=1 // pred_fallthru
      _
    // Predicated region
    $region10: #{tpu_custom_call.1} parent=1 // pred_check
      _
    $region11: #{tpu_custom_call.1} parent=1 // pred_check_branch
      %33 = sbr.rel (0) target = $region13
    $region12: #{tpu_custom_call.1} parent=1 // pred_region
      %s35 = ssub.s32 6144, 6144
      %36 = vsyncadd [#allocation8], %s35
      %s37 = sshll.u32 [#allocation7], 4
      %s38 = int_to_ptr.vmem [resolvable:$true] %s37
      %43 = dma.hbm_to_vmem [thread:$0]  %s3, 6144, %s38, [#allocation8], 384, 384, 24
    $region13: #{tpu_custom_call.1} parent=1 // pred_fallthru
      _
    // Predicated region
    $region14: #{tpu_custom_call.1} parent=1 // pred_check
      _
    $region15: #{tpu_custom_call.1} parent=1 // pred_check_branch
      %45 = sbr.rel (0) target = $region17
    $region16: #{tpu_custom_call.1} parent=1 // pred_region
      _
    $region17: #{tpu_custom_call.1} parent=1 // pred_fallthru
      _
    // Predicated region
    $region18: #{tpu_custom_call.1} parent=1 // pred_check
      _
    $region19: #{tpu_custom_call.1} parent=1 // pred_check_branch
      %47 = sbr.rel (0) target = $region21
    $region20: #{tpu_custom_call.1} parent=1 // pred_region
      _
    $region21: #{tpu_custom_call.1} parent=1 // pred_fallthru
      _
    // Predicated region
    $region22: #{tpu_custom_call.1} parent=1 // pred_check
      _
    $region23: #{tpu_custom_call.1} parent=1 // pred_check_branch
      %49 = sbr.rel (0) target = $region25
    $region24: #{tpu_custom_call.1} parent=1 // pred_region
      %50 = dma.done [#allocation5], 768
    $region25: #{tpu_custom_call.1} parent=1 // pred_fallthru
      _
    // Predicated region
    $region26: #{tpu_custom_call.1} parent=1 // pred_check
      _
    $region27: #{tpu_custom_call.1} parent=1 // pred_check_branch
      %52 = sbr.rel (0) target = $region29
    $region28: #{tpu_custom_call.1} parent=1 // pred_region
      %53 = dma.done [#allocation8], 6144
    $region29: #{tpu_custom_call.1} parent=1 // pred_fallthru
      _
    %s54 = sld [smem:[#allocation3]]
    %s55 = sshra.s32 %s54, 3
    %s56 = sand.u32 %s54, 7
    %s57 = sshra.s32 %s54, 3
    %s58 = sand.u32 %s54, 7
    %s59 = smul.u32 %s55, 3
    %s60 = smul.u32 %s59, 8
    %s61 = sadd.s32 %s60, %s58
    %s62 = scalar_lea.vmem [#allocation4], %s61
    %v63 = vld [vmem:[%s62] ss:$8 sm:$0x7]
    %s64 = sld [smem:[#allocation3 + $0x1]]
    %s65 = sshra.s32 %s64, 3
    %s66 = sand.u32 %s64, 7
    %s67 = sshra.s32 %s64, 3
    %s68 = sand.u32 %s64, 7
    %s69 = smul.u32 %s65, 3
    %s70 = smul.u32 %s69, 8
    %s71 = sadd.s32 %s70, %s68
    %s72 = scalar_lea.vmem [#allocation4], %s71
    %v73 = vld [vmem:[%s72] ss:$8 sm:$0x7]
    %s74 = sld [smem:[#allocation3 + $0x2]]
    %s75 = sshra.s32 %s74, 3
    %s76 = sand.u32 %s74, 7
    %s77 = sshra.s32 %s74, 3
    %s78 = sand.u32 %s74, 7
    %s79 = smul.u32 %s75, 3
    %s80 = smul.u32 %s79, 8
    %s81 = sadd.s32 %s80, %s78
    %s82 = scalar_lea.vmem [#allocation4], %s81
    %v83 = vld [vmem:[%s82] ss:$8 sm:$0x7]
    %s84 = sld [smem:[#allocation3 + $0x3]]
    %s85 = sshra.s32 %s84, 3
    %s86 = sand.u32 %s84, 7
    %s87 = sshra.s32 %s84, 3
    %s88 = sand.u32 %s84, 7
    %s89 = smul.u32 %s85, 3
    %s90 = smul.u32 %s89, 8
    %s91 = sadd.s32 %s90, %s88
    %s92 = scalar_lea.vmem [#allocation4], %s91
    %v93 = vld [vmem:[%s92] ss:$8 sm:$0x7]
    %s94 = sld [smem:[#allocation3 + $0x4]]
    %s95 = sshra.s32 %s94, 3
    %s96 = sand.u32 %s94, 7
    %s97 = sshra.s32 %s94, 3
    %s98 = sand.u32 %s94, 7
    %s99 = smul.u32 %s95, 3
    %s100 = smul.u32 %s99, 8
    %s101 = sadd.s32 %s100, %s98
    %s102 = scalar_lea.vmem [#allocation4], %s101
    %v103 = vld [vmem:[%s102] ss:$8 sm:$0x7]
    %s104 = sld [smem:[#allocation3 + $0x5]]
    %s105 = sshra.s32 %s104, 3
    %s106 = sand.u32 %s104, 7
    %s107 = sshra.s32 %s104, 3
    %s108 = sand.u32 %s104, 7
    %s109 = smul.u32 %s105, 3
    %s110 = smul.u32 %s109, 8
    %s111 = sadd.s32 %s110, %s108
    %s112 = scalar_lea.vmem [#allocation4], %s111
    %v113 = vld [vmem:[%s112] ss:$8 sm:$0x7]
    %s114 = sld [smem:[#allocation3 + $0x6]]
    %s115 = sshra.s32 %s114, 3
    %s116 = sand.u32 %s114, 7
    %s117 = sshra.s32 %s114, 3
    %s118 = sand.u32 %s114, 7
    %s119 = smul.u32 %s115, 3
    %s120 = smul.u32 %s119, 8
    %s121 = sadd.s32 %s120, %s118
    %s122 = scalar_lea.vmem [#allocation4], %s121
    %v123 = vld [vmem:[%s122] ss:$8 sm:$0x7]
    %s124 = sld [smem:[#allocation3 + $0x7]]
    %s125 = sshra.s32 %s124, 3
    %s126 = sand.u32 %s124, 7
    %s127 = sshra.s32 %s124, 3
    %s128 = sand.u32 %s124, 7
    %s129 = smul.u32 %s125, 3
    %s130 = smul.u32 %s129, 8
    %s131 = sadd.s32 %s130, %s128
    %s132 = scalar_lea.vmem [#allocation4], %s131
    %v133 = vld [vmem:[%s132] ss:$8 sm:$0x7]
    %v134 = vld [vmem:[#allocation7] sm:$0xff]
    %v135 = vld [vmem:[#allocation7 + $0x8] sm:$0xff]
    %v136 = vld [vmem:[#allocation7 + $0x10] sm:$0xff]
    %v137 = vld [vmem:[#allocation7 + $0x18] sm:$0xff]
    %v138 = vld [vmem:[#allocation7 + $0x20] sm:$0xff]
    %v139 = vld [vmem:[#allocation7 + $0x28] sm:$0xff]
    %v140 = vld [vmem:[#allocation7 + $0x30] sm:$0xff]
    %v141 = vld [vmem:[#allocation7 + $0x38] sm:$0xff]
    %v142 = vld [vmem:[#allocation7 + $0x40] sm:$0xff]
    %v143 = vld [vmem:[#allocation7 + $0x48] sm:$0xff]
    %v144 = vld [vmem:[#allocation7 + $0x50] sm:$0xff]
    %v145 = vld [vmem:[#allocation7 + $0x58] sm:$0xff]
    %v146 = vld [vmem:[#allocation7 + $0x60] sm:$0xff]
    %v147 = vld [vmem:[#allocation7 + $0x68] sm:$0xff]
    %v148 = vld [vmem:[#allocation7 + $0x70] sm:$0xff]
    %v149 = vld [vmem:[#allocation7 + $0x78] sm:$0xff]
    %v150 = vld [vmem:[#allocation7 + $0x80] sm:$0xff]
    %v151 = vld [vmem:[#allocation7 + $0x88] sm:$0xff]
    %v152 = vld [vmem:[#allocation7 + $0x90] sm:$0xff]
    %v153 = vld [vmem:[#allocation7 + $0x98] sm:$0xff]
    %v154 = vld [vmem:[#allocation7 + $0xa0] sm:$0xff]
    %v155 = vld [vmem:[#allocation7 + $0xa8] sm:$0xff]
    %v156 = vld [vmem:[#allocation7 + $0xb0] sm:$0xff]
    %v157 = vld [vmem:[#allocation7 + $0xb8] sm:$0xff]
    %v158 = vld [vmem:[#allocation7 + $0xc0] sm:$0xff]
    %v159 = vld [vmem:[#allocation7 + $0xc8] sm:$0xff]
    %v160 = vld [vmem:[#allocation7 + $0xd0] sm:$0xff]
    %v161 = vld [vmem:[#allocation7 + $0xd8] sm:$0xff]
    %v162 = vld [vmem:[#allocation7 + $0xe0] sm:$0xff]
    %v163 = vld [vmem:[#allocation7 + $0xe8] sm:$0xff]
    %v164 = vld [vmem:[#allocation7 + $0xf0] sm:$0xff]
    %v165 = vld [vmem:[#allocation7 + $0xf8] sm:$0xff]
    %v166 = vld [vmem:[#allocation7 + $0x100] sm:$0xff]
    %v167 = vld [vmem:[#allocation7 + $0x108] sm:$0xff]
    %v168 = vld [vmem:[#allocation7 + $0x110] sm:$0xff]
    %v169 = vld [vmem:[#allocation7 + $0x118] sm:$0xff]
    %v170 = vld [vmem:[#allocation7 + $0x120] sm:$0xff]
    %v171 = vld [vmem:[#allocation7 + $0x128] sm:$0xff]
    %v172 = vld [vmem:[#allocation7 + $0x130] sm:$0xff]
    %v173 = vld [vmem:[#allocation7 + $0x138] sm:$0xff]
    %v174 = vld [vmem:[#allocation7 + $0x140] sm:$0xff]
    %v175 = vld [vmem:[#allocation7 + $0x148] sm:$0xff]
    %v176 = vld [vmem:[#allocation7 + $0x150] sm:$0xff]
    %v177 = vld [vmem:[#allocation7 + $0x158] sm:$0xff]
    %v178 = vld [vmem:[#allocation7 + $0x160] sm:$0xff]
    %v179 = vld [vmem:[#allocation7 + $0x168] sm:$0xff]
    %v180 = vld [vmem:[#allocation7 + $0x170] sm:$0xff]
    %v181 = vld [vmem:[#allocation7 + $0x178] sm:$0xff]
    %v182 = vld [vmem:[%s4] sm:$0x3]
    %v183 = vld [vmem:[%s5] sm:$0x1]
    %v184 = vld [vmem:[%s2] sm:$0x1]
    %185 = vmatprep.subr.mxu0 %v135
    %186 = vmatpush1.msra.mxu0 %v134
    %187 = vmatprep.subr.mxu0 %v138
    %188 = vmatpush1.msra.mxu0 %v137
    %189 = vmatprep.subr.mxu0 %v141
    %190 = vmatpush1.msra.mxu0 %v140
    %191 = vmatprep.subr.mxu0 %v144
    %192 = vmatpush1.msra.mxu0 %v143
    %193 = vmatprep.subr.mxu0 %v147
    %194 = vmatpush1.msra.mxu0 %v146
    %195 = vmatprep.subr.mxu0 %v150
    %196 = vmatpush1.msra.mxu0 %v149
    %197 = vmatprep.subr.mxu0 %v153
    %198 = vmatpush1.msra.mxu0 %v152
    %199 = vmatprep.subr.mxu0 %v156
    %200 = vmatpush1.msra.mxu0 %v155
    %201 = vmatprep.subr.mxu0 %v159
    %202 = vmatpush1.msra.mxu0 %v158
    %203 = vmatprep.subr.mxu0 %v162
    %204 = vmatpush1.msra.mxu0 %v161
    %205 = vmatprep.subr.mxu0 %v165
    %206 = vmatpush1.msra.mxu0 %v164
    %207 = vmatprep.subr.mxu0 %v168
    %208 = vmatpush1.msra.mxu0 %v167
    %209 = vmatprep.subr.mxu0 %v171
    %210 = vmatpush1.msra.mxu0 %v170
    %211 = vmatprep.subr.mxu0 %v174
    %212 = vmatpush1.msra.mxu0 %v173
    %213 = vmatprep.subr.mxu0 %v177
    %214 = vmatpush1.msra.mxu0 %v176
    %215 = vmatprep.subr.mxu0 %v180
    %216 = vmatpush1.msra.mxu0 %v179
    %217 = vmatprep.subr.mxu0 0.0
    %218 = vmatpush1.msra.mxu0 0.0
    %219 = vmatprep.subr.mxu0 0.0
    %220 = vmatpush1.msra.mxu0 0.0
    %221 = vmatprep.subr.mxu0 0.0
    %222 = vmatpush1.msra.mxu0 0.0
    %223 = vmatprep.subr.mxu0 0.0
    %224 = vmatpush1.msra.mxu0 0.0
    %225 = vmatprep.subr.mxu0 0.0
    %226 = vmatpush1.msra.mxu0 0.0
    %227 = vmatprep.subr.mxu0 0.0
    %228 = vmatpush1.msra.mxu0 0.0
    %229 = vmatprep.subr.mxu0 0.0
    %230 = vmatpush1.msra.mxu0 0.0
    %231 = vmatprep.subr.mxu0 0.0
    %232 = vmatpush1.msra.mxu0 0.0
    %233 = vmatprep.subr.mxu0 0.0
    %234 = vmatpush1.msra.mxu0 0.0
    %235 = vmatprep.subr.mxu0 0.0
    %236 = vmatpush1.msra.mxu0 0.0
    %237 = vmatprep.subr.mxu0 0.0
    %238 = vmatpush1.msra.mxu0 0.0
    %239 = vmatprep.subr.mxu0 0.0
    %240 = vmatpush1.msra.mxu0 0.0
    %241 = vmatprep.subr.mxu0 0.0
    %242 = vmatpush1.msra.mxu0 0.0
    %243 = vmatprep.subr.mxu0 0.0
    %244 = vmatpush1.msra.mxu0 0.0
    %245 = vmatprep.subr.mxu0 0.0
    %246 = vmatpush1.msra.mxu0 0.0
    %247 = vmatprep.subr.mxu0 0.0
    %248 = vmatpush1.msra.mxu0 0.0
    %249 = vmatprep.mubr.f32.mxu0 0.0
    %250 = vmatmul.mubr.f32.gmra.mrb[0].mxu0 %v184
    %v251 = vpop.f32.mrb[0].mxu0
    %v252 = vadd.f32 0.0, %v251
    %v253 = vpop.f32.mrb[0].mxu0
    %v254 = vadd.f32 0.0, %v253
    %255 = vdwg.mxu0
    %256 = vmatprep.subr.mxu0 0.0
    %257 = vmatpush1.msra.mxu0 %v136
    %258 = vmatprep.subr.mxu0 0.0
    %259 = vmatpush1.msra.mxu0 %v139
    %260 = vmatprep.subr.mxu0 0.0
    %261 = vmatpush1.msra.mxu0 %v142
    %262 = vmatprep.subr.mxu0 0.0
    %263 = vmatpush1.msra.mxu0 %v145
    %264 = vmatprep.subr.mxu0 0.0
    %265 = vmatpush1.msra.mxu0 %v148
    %266 = vmatprep.subr.mxu0 0.0
    %267 = vmatpush1.msra.mxu0 %v151
    %268 = vmatprep.subr.mxu0 0.0
    %269 = vmatpush1.msra.mxu0 %v154
    %270 = vmatprep.subr.mxu0 0.0
    %271 = vmatpush1.msra.mxu0 %v157
    %272 = vmatprep.subr.mxu0 0.0
    %273 = vmatpush1.msra.mxu0 %v160
    %274 = vmatprep.subr.mxu0 0.0
    %275 = vmatpush1.msra.mxu0 %v163
    %276 = vmatprep.subr.mxu0 0.0
    %277 = vmatpush1.msra.mxu0 %v166
    %278 = vmatprep.subr.mxu0 0.0
    %279 = vmatpush1.msra.mxu0 %v169
    %280 = vmatprep.subr.mxu0 0.0
    %281 = vmatpush1.msra.mxu0 %v172
    %282 = vmatprep.subr.mxu0 0.0
    %283 = vmatpush1.msra.mxu0 %v175
    %284 = vmatprep.subr.mxu0 0.0
    %285 = vmatpush1.msra.mxu0 %v178
    %286 = vmatprep.subr.mxu0 0.0
    %287 = vmatpush1.msra.mxu0 %v181
    %288 = vmatprep.subr.mxu0 0.0
    %289 = vmatpush1.msra.mxu0 0.0
    %290 = vmatprep.subr.mxu0 0.0
    %291 = vmatpush1.msra.mxu0 0.0
    %292 = vmatprep.subr.mxu0 0.0
    %293 = vmatpush1.msra.mxu0 0.0
    %294 = vmatprep.subr.mxu0 0.0
    %295 = vmatpush1.msra.mxu0 0.0
    %296 = vmatprep.subr.mxu0 0.0
    %297 = vmatpush1.msra.mxu0 0.0
    %298 = vmatprep.subr.mxu0 0.0
    %299 = vmatpush1.msra.mxu0 0.0
    %300 = vmatprep.subr.mxu0 0.0
    %301 = vmatpush1.msra.mxu0 0.0
    %302 = vmatprep.subr.mxu0 0.0
    %303 = vmatpush1.msra.mxu0 0.0
    %304 = vmatprep.subr.mxu0 0.0
    %305 = vmatpush1.msra.mxu0 0.0
    %306 = vmatprep.subr.mxu0 0.0
    %307 = vmatpush1.msra.mxu0 0.0
    %308 = vmatprep.subr.mxu0 0.0
    %309 = vmatpush1.msra.mxu0 0.0
    %310 = vmatprep.subr.mxu0 0.0
    %311 = vmatpush1.msra.mxu0 0.0
    %312 = vmatprep.subr.mxu0 0.0
    %313 = vmatpush1.msra.mxu0 0.0
    %314 = vmatprep.subr.mxu0 0.0
    %315 = vmatpush1.msra.mxu0 0.0
    %316 = vmatprep.subr.mxu0 0.0
    %317 = vmatpush1.msra.mxu0 0.0
    %318 = vmatprep.subr.mxu0 0.0
    %319 = vmatpush1.msra.mxu0 0.0
    %320 = vmatprep.mubr.f32.mxu0 0.0
    %321 = vmatmul.mubr.f32.gmra.mrb[0].mxu0 %v184
    %v322 = vpop.f32.mrb[0].mxu0
    %v323 = vadd.f32 0.0, %v322
    %v324 = vpop.f32.mrb[0].mxu0
    %325 = vdwg.mxu0
    %v328 = vcombine.low %v252, %v254
    %v330 = vunpack.c.l.s4 1966171168
    %v331 = vunpack.c.0.s8 %v330
    %v332 = vlaneseq
    %v333 = vshrl.u32 %v332, 7
    %v334 = vsub.s32 %v331, %v333
    %v335 = vrot.slane %v328, %v334
    %v337 = vunpack.c.l.s4 1966171168
    %v338 = vunpack.c.0.s8 %v337
    %v339 = vlaneseq
    %v340 = vshrl.u32 %v339, 7
    %v341 = vsub.s32 %v338, %v340
    %v342 = vrot.slane %v335, %v341
    %v344 = vadd.f32 %v63, %v342
    %v345 = vadd.f32 %v344, %v182
    %v346 = vxor.u32 %v345, 2147483648
    %v347 = vmul.f32 %v346, 1.442695
    %v348 = vpow.pop %v347
    %v349 = vadd.f32 %v348, 1.0
    %v350 = vrcp.pop %v349
    %v351 = vmul.f32 1.0, %v350
    %v352 = vadd.f32 %v323, %v183
    %v353 = vmul.f32 %v351, %v352
    %v355 = vrot.slane %v63, 2
    %v357 = vadd.f32 %v355, %v353
    %v358 = vtanh.pop %v357
    %v360 = vrot.slane %v351, 1
    %v362 = vsub.f32 1.0, %v360
    %v363 = vmul.f32 %v362, %v358
    %v364 = vmul.f32 %v360, %v184
    %v365 = vadd.f32 %v363, %v364
    %366 = vmatprep.subr.mxu0 %v135
    %367 = vmatpush1.msra.mxu0 %v134
    %368 = vmatprep.subr.mxu0 %v138
    %369 = vmatpush1.msra.mxu0 %v137
    %370 = vmatprep.subr.mxu0 %v141
    %371 = vmatpush1.msra.mxu0 %v140
    %372 = vmatprep.subr.mxu0 %v144
    %373 = vmatpush1.msra.mxu0 %v143
    %374 = vmatprep.subr.mxu0 %v147
    %375 = vmatpush1.msra.mxu0 %v146
    %376 = vmatprep.subr.mxu0 %v150
    %377 = vmatpush1.msra.mxu0 %v149
    %378 = vmatprep.subr.mxu0 %v153
    %379 = vmatpush1.msra.mxu0 %v152
    %380 = vmatprep.subr.mxu0 %v156
    %381 = vmatpush1.msra.mxu0 %v155
    %382 = vmatprep.subr.mxu0 %v159
    %383 = vmatpush1.msra.mxu0 %v158
    %384 = vmatprep.subr.mxu0 %v162
    %385 = vmatpush1.msra.mxu0 %v161
    %386 = vmatprep.subr.mxu0 %v165
    %387 = vmatpush1.msra.mxu0 %v164
    %388 = vmatprep.subr.mxu0 %v168
    %389 = vmatpush1.msra.mxu0 %v167
    %390 = vmatprep.subr.mxu0 %v171
    %391 = vmatpush1.msra.mxu0 %v170
    %392 = vmatprep.subr.mxu0 %v174
    %393 = vmatpush1.msra.mxu0 %v173
    %394 = vmatprep.subr.mxu0 %v177
    %395 = vmatpush1.msra.mxu0 %v176
    %396 = vmatprep.subr.mxu0 %v180
    %397 = vmatpush1.msra.mxu0 %v179
    %398 = vmatprep.subr.mxu0 0.0
    %399 = vmatpush1.msra.mxu0 0.0
    %400 = vmatprep.subr.mxu0 0.0
    %401 = vmatpush1.msra.mxu0 0.0
    %402 = vmatprep.subr.mxu0 0.0
    %403 = vmatpush1.msra.mxu0 0.0
    %404 = vmatprep.subr.mxu0 0.0
    %405 = vmatpush1.msra.mxu0 0.0
    %406 = vmatprep.subr.mxu0 0.0
    %407 = vmatpush1.msra.mxu0 0.0
    %408 = vmatprep.subr.mxu0 0.0
    %409 = vmatpush1.msra.mxu0 0.0
    %410 = vmatprep.subr.mxu0 0.0
    %411 = vmatpush1.msra.mxu0 0.0
    %412 = vmatprep.subr.mxu0 0.0
    %413 = vmatpush1.msra.mxu0 0.0
    %414 = vmatprep.subr.mxu0 0.0
    %415 = vmatpush1.msra.mxu0 0.0
    %416 = vmatprep.subr.mxu0 0.0
    %417 = vmatpush1.msra.mxu0 0.0
    %418 = vmatprep.subr.mxu0 0.0
    %419 = vmatpush1.msra.mxu0 0.0
    %420 = vmatprep.subr.mxu0 0.0
    %421 = vmatpush1.msra.mxu0 0.0
    %422 = vmatprep.subr.mxu0 0.0
    %423 = vmatpush1.msra.mxu0 0.0
    %424 = vmatprep.subr.mxu0 0.0
    %425 = vmatpush1.msra.mxu0 0.0
    %426 = vmatprep.subr.mxu0 0.0
    %427 = vmatpush1.msra.mxu0 0.0
    %428 = vmatprep.subr.mxu0 0.0
    %429 = vmatpush1.msra.mxu0 0.0
    %430 = vmatprep.mubr.f32.mxu0 0.0
    %431 = vmatmul.mubr.f32.gmra.mrb[0].mxu0 %v365
    %v432 = vpop.f32.mrb[0].mxu0
    %v433 = vadd.f32 0.0, %v432
    %v434 = vpop.f32.mrb[0].mxu0
    %v435 = vadd.f32 0.0, %v434
    %436 = vdwg.mxu0
    %437 = vmatprep.subr.mxu0 0.0
    %438 = vmatpush1.msra.mxu0 %v136
    %439 = vmatprep.subr.mxu0 0.0
    %440 = vmatpush1.msra.mxu0 %v139
    %441 = vmatprep.subr.mxu0 0.0
    %442 = vmatpush1.msra.mxu0 %v142
    %443 = vmatprep.subr.mxu0 0.0
    %444 = vmatpush1.msra.mxu0 %v145
    %445 = vmatprep.subr.mxu0 0.0
    %446 = vmatpush1.msra.mxu0 %v148
    %447 = vmatprep.subr.mxu0 0.0
    %448 = vmatpush1.msra.mxu0 %v151
    %449 = vmatprep.subr.mxu0 0.0
    %450 = vmatpush1.msra.mxu0 %v154
    %451 = vmatprep.subr.mxu0 0.0
    %452 = vmatpush1.msra.mxu0 %v157
    %453 = vmatprep.subr.mxu0 0.0
    %454 = vmatpush1.msra.mxu0 %v160
    %455 = vmatprep.subr.mxu0 0.0
    %456 = vmatpush1.msra.mxu0 %v163
    %457 = vmatprep.subr.mxu0 0.0
    %458 = vmatpush1.msra.mxu0 %v166
    %459 = vmatprep.subr.mxu0 0.0
    %460 = vmatpush1.msra.mxu0 %v169
    %461 = vmatprep.subr.mxu0 0.0
    %462 = vmatpush1.msra.mxu0 %v172
    %463 = vmatprep.subr.mxu0 0.0
    %464 = vmatpush1.msra.mxu0 %v175
    %465 = vmatprep.subr.mxu0 0.0
    %466 = vmatpush1.msra.mxu0 %v178
    %467 = vmatprep.subr.mxu0 0.0
    %468 = vmatpush1.msra.mxu0 %v181
    %469 = vmatprep.subr.mxu0 0.0
    %470 = vmatpush1.msra.mxu0 0.0
    %471 = vmatprep.subr.mxu0 0.0
    %472 = vmatpush1.msra.mxu0 0.0
    %473 = vmatprep.subr.mxu0 0.0
    %474 = vmatpush1.msra.mxu0 0.0
    %475 = vmatprep.subr.mxu0 0.0
    %476 = vmatpush1.msra.mxu0 0.0
    %477 = vmatprep.subr.mxu0 0.0
    %478 = vmatpush1.msra.mxu0 0.0
    %479 = vmatprep.subr.mxu0 0.0
    %480 = vmatpush1.msra.mxu0 0.0
    %481 = vmatprep.subr.mxu0 0.0
    %482 = vmatpush1.msra.mxu0 0.0
    %483 = vmatprep.subr.mxu0 0.0
    %484 = vmatpush1.msra.mxu0 0.0
    %485 = vmatprep.subr.mxu0 0.0
    %486 = vmatpush1.msra.mxu0 0.0
    %487 = vmatprep.subr.mxu0 0.0
    %488 = vmatpush1.msra.mxu0 0.0
    %489 = vmatprep.subr.mxu0 0.0
    %490 = vmatpush1.msra.mxu0 0.0
    %491 = vmatprep.subr.mxu0 0.0
    %492 = vmatpush1.msra.mxu0 0.0
    %493 = vmatprep.subr.mxu0 0.0
    %494 = vmatpush1.msra.mxu0 0.0
    %495 = vmatprep.subr.mxu0 0.0
    %496 = vmatpush1.msra.mxu0 0.0
    %497 = vmatprep.subr.mxu0 0.0
    %498 = vmatpush1.msra.mxu0 0.0
    %499 = vmatprep.subr.mxu0 0.0
    %500 = vmatpush1.msra.mxu0 0.0
    %501 = vmatprep.mubr.f32.mxu0 0.0
    %502 = vmatmul.mubr.f32.gmra.mrb[0].mxu0 %v365
    %v503 = vpop.f32.mrb[0].mxu0
    %v504 = vadd.f32 0.0, %v503
    %v505 = vpop.f32.mrb[0].mxu0
    %506 = vdwg.mxu0
    %v509 = vcombine.low %v433, %v435
    %v511 = vunpack.c.l.s4 1966171168
    %v512 = vunpack.c.0.s8 %v511
    %v513 = vlaneseq
    %v514 = vshrl.u32 %v513, 7
    %v515 = vsub.s32 %v512, %v514
    %v516 = vrot.slane %v509, %v515
    %v518 = vunpack.c.l.s4 1966171168
    %v519 = vunpack.c.0.s8 %v518
    %v520 = vlaneseq
    %v521 = vshrl.u32 %v520, 7
    %v522 = vsub.s32 %v519, %v521
    %v523 = vrot.slane %v516, %v522
    %v525 = vadd.f32 %v73, %v523
    %v526 = vadd.f32 %v525, %v182
    %v527 = vxor.u32 %v526, 2147483648
    %v528 = vmul.f32 %v527, 1.442695
    %v529 = vpow.pop %v528
    %v530 = vadd.f32 %v529, 1.0
    %v531 = vrcp.pop %v530
    %v532 = vmul.f32 1.0, %v531
    %v533 = vadd.f32 %v504, %v183
    %v534 = vmul.f32 %v532, %v533
    %v536 = vrot.slane %v73, 2
    %v538 = vadd.f32 %v536, %v534
    %v539 = vtanh.pop %v538
    %v541 = vrot.slane %v532, 1
    %v543 = vsub.f32 1.0, %v541
    %v544 = vmul.f32 %v543, %v539
    %v545 = vmul.f32 %v541, %v365
    %v546 = vadd.f32 %v544, %v545
    %547 = vmatprep.subr.mxu0 %v135
    %548 = vmatpush1.msra.mxu0 %v134
    %549 = vmatprep.subr.mxu0 %v138
    %550 = vmatpush1.msra.mxu0 %v137
    %551 = vmatprep.subr.mxu0 %v141
    %552 = vmatpush1.msra.mxu0 %v140
    %553 = vmatprep.subr.mxu0 %v144
    %554 = vmatpush1.msra.mxu0 %v143
    %555 = vmatprep.subr.mxu0 %v147
    %556 = vmatpush1.msra.mxu0 %v146
    %557 = vmatprep.subr.mxu0 %v150
    %558 = vmatpush1.msra.mxu0 %v149
    %559 = vmatprep.subr.mxu0 %v153
    %560 = vmatpush1.msra.mxu0 %v152
    %561 = vmatprep.subr.mxu0 %v156
    %562 = vmatpush1.msra.mxu0 %v155
    %563 = vmatprep.subr.mxu0 %v159
    %564 = vmatpush1.msra.mxu0 %v158
    %565 = vmatprep.subr.mxu0 %v162
    %566 = vmatpush1.msra.mxu0 %v161
    %567 = vmatprep.subr.mxu0 %v165
    %568 = vmatpush1.msra.mxu0 %v164
    %569 = vmatprep.subr.mxu0 %v168
    %570 = vmatpush1.msra.mxu0 %v167
    %571 = vmatprep.subr.mxu0 %v171
    %572 = vmatpush1.msra.mxu0 %v170
    %573 = vmatprep.subr.mxu0 %v174
    %574 = vmatpush1.msra.mxu0 %v173
    %575 = vmatprep.subr.mxu0 %v177
    %576 = vmatpush1.msra.mxu0 %v176
    %577 = vmatprep.subr.mxu0 %v180
    %578 = vmatpush1.msra.mxu0 %v179
    %579 = vmatprep.subr.mxu0 0.0
    %580 = vmatpush1.msra.mxu0 0.0
    %581 = vmatprep.subr.mxu0 0.0
    %582 = vmatpush1.msra.mxu0 0.0
    %583 = vmatprep.subr.mxu0 0.0
    %584 = vmatpush1.msra.mxu0 0.0
    %585 = vmatprep.subr.mxu0 0.0
    %586 = vmatpush1.msra.mxu0 0.0
    %587 = vmatprep.subr.mxu0 0.0
    %588 = vmatpush1.msra.mxu0 0.0
    %589 = vmatprep.subr.mxu0 0.0
    %590 = vmatpush1.msra.mxu0 0.0
    %591 = vmatprep.subr.mxu0 0.0
    %592 = vmatpush1.msra.mxu0 0.0
    %593 = vmatprep.subr.mxu0 0.0
    %594 = vmatpush1.msra.mxu0 0.0
    %595 = vmatprep.subr.mxu0 0.0
    %596 = vmatpush1.msra.mxu0 0.0
    %597 = vmatprep.subr.mxu0 0.0
    %598 = vmatpush1.msra.mxu0 0.0
    %599 = vmatprep.subr.mxu0 0.0
    %600 = vmatpush1.msra.mxu0 0.0
    %601 = vmatprep.subr.mxu0 0.0
    %602 = vmatpush1.msra.mxu0 0.0
    %603 = vmatprep.subr.mxu0 0.0
    %604 = vmatpush1.msra.mxu0 0.0
    %605 = vmatprep.subr.mxu0 0.0
    %606 = vmatpush1.msra.mxu0 0.0
    %607 = vmatprep.subr.mxu0 0.0
    %608 = vmatpush1.msra.mxu0 0.0
    %609 = vmatprep.subr.mxu0 0.0
    %610 = vmatpush1.msra.mxu0 0.0
    %611 = vmatprep.mubr.f32.mxu0 0.0
    %612 = vmatmul.mubr.f32.gmra.mrb[0].mxu0 %v546
    %v613 = vpop.f32.mrb[0].mxu0
    %v614 = vadd.f32 0.0, %v613
    %v615 = vpop.f32.mrb[0].mxu0
    %v616 = vadd.f32 0.0, %v615
    %617 = vdwg.mxu0
    %618 = vmatprep.subr.mxu0 0.0
    %619 = vmatpush1.msra.mxu0 %v136
    %620 = vmatprep.subr.mxu0 0.0
    %621 = vmatpush1.msra.mxu0 %v139
    %622 = vmatprep.subr.mxu0 0.0
    %623 = vmatpush1.msra.mxu0 %v142
    %624 = vmatprep.subr.mxu0 0.0
    %625 = vmatpush1.msra.mxu0 %v145
    %626 = vmatprep.subr.mxu0 0.0
    %627 = vmatpush1.msra.mxu0 %v148
    %628 = vmatprep.subr.mxu0 0.0
    %629 = vmatpush1.msra.mxu0 %v151
    %630 = vmatprep.subr.mxu0 0.0
    %631 = vmatpush1.msra.mxu0 %v154
    %632 = vmatprep.subr.mxu0 0.0
    %633 = vmatpush1.msra.mxu0 %v157
    %634 = vmatprep.subr.mxu0 0.0
    %635 = vmatpush1.msra.mxu0 %v160
    %636 = vmatprep.subr.mxu0 0.0
    %637 = vmatpush1.msra.mxu0 %v163
    %638 = vmatprep.subr.mxu0 0.0
    %639 = vmatpush1.msra.mxu0 %v166
    %640 = vmatprep.subr.mxu0 0.0
    %641 = vmatpush1.msra.mxu0 %v169
    %642 = vmatprep.subr.mxu0 0.0
    %643 = vmatpush1.msra.mxu0 %v172
    %644 = vmatprep.subr.mxu0 0.0
    %645 = vmatpush1.msra.mxu0 %v175
    %646 = vmatprep.subr.mxu0 0.0
    %647 = vmatpush1.msra.mxu0 %v178
    %648 = vmatprep.subr.mxu0 0.0
    %649 = vmatpush1.msra.mxu0 %v181
    %650 = vmatprep.subr.mxu0 0.0
    %651 = vmatpush1.msra.mxu0 0.0
    %652 = vmatprep.subr.mxu0 0.0
    %653 = vmatpush1.msra.mxu0 0.0
    %654 = vmatprep.subr.mxu0 0.0
    %655 = vmatpush1.msra.mxu0 0.0
    %656 = vmatprep.subr.mxu0 0.0
    %657 = vmatpush1.msra.mxu0 0.0
    %658 = vmatprep.subr.mxu0 0.0
    %659 = vmatpush1.msra.mxu0 0.0
    %660 = vmatprep.subr.mxu0 0.0
    %661 = vmatpush1.msra.mxu0 0.0
    %662 = vmatprep.subr.mxu0 0.0
    %663 = vmatpush1.msra.mxu0 0.0
    %664 = vmatprep.subr.mxu0 0.0
    %665 = vmatpush1.msra.mxu0 0.0
    %666 = vmatprep.subr.mxu0 0.0
    %667 = vmatpush1.msra.mxu0 0.0
    %668 = vmatprep.subr.mxu0 0.0
    %669 = vmatpush1.msra.mxu0 0.0
    %670 = vmatprep.subr.mxu0 0.0
    %671 = vmatpush1.msra.mxu0 0.0
    %672 = vmatprep.subr.mxu0 0.0
    %673 = vmatpush1.msra.mxu0 0.0
    %674 = vmatprep.subr.mxu0 0.0
    %675 = vmatpush1.msra.mxu0 0.0
    %676 = vmatprep.subr.mxu0 0.0
    %677 = vmatpush1.msra.mxu0 0.0
    %678 = vmatprep.subr.mxu0 0.0
    %679 = vmatpush1.msra.mxu0 0.0
    %680 = vmatprep.subr.mxu0 0.0
    %681 = vmatpush1.msra.mxu0 0.0
    %682 = vmatprep.mubr.f32.mxu0 0.0
    %683 = vmatmul.mubr.f32.gmra.mrb[0].mxu0 %v546
    %v684 = vpop.f32.mrb[0].mxu0
    %v685 = vadd.f32 0.0, %v684
    %v686 = vpop.f32.mrb[0].mxu0
    %687 = vdwg.mxu0
    %v690 = vcombine.low %v614, %v616
    %v692 = vunpack.c.l.s4 1966171168
    %v693 = vunpack.c.0.s8 %v692
    %v694 = vlaneseq
    %v695 = vshrl.u32 %v694, 7
    %v696 = vsub.s32 %v693, %v695
    %v697 = vrot.slane %v690, %v696
    %v699 = vunpack.c.l.s4 1966171168
    %v700 = vunpack.c.0.s8 %v699
    %v701 = vlaneseq
    %v702 = vshrl.u32 %v701, 7
    %v703 = vsub.s32 %v700, %v702
    %v704 = vrot.slane %v697, %v703
    %v706 = vadd.f32 %v83, %v704
    %v707 = vadd.f32 %v706, %v182
    %v708 = vxor.u32 %v707, 2147483648
    %v709 = vmul.f32 %v708, 1.442695
    %v710 = vpow.pop %v709
    %v711 = vadd.f32 %v710, 1.0
    %v712 = vrcp.pop %v711
    %v713 = vmul.f32 1.0, %v712
    %v714 = vadd.f32 %v685, %v183
    %v715 = vmul.f32 %v713, %v714
    %v717 = vrot.slane %v83, 2
    %v719 = vadd.f32 %v717, %v715
    %v720 = vtanh.pop %v719
    %v722 = vrot.slane %v713, 1
    %v724 = vsub.f32 1.0, %v722
    %v725 = vmul.f32 %v724, %v720
    %v726 = vmul.f32 %v722, %v546
    %v727 = vadd.f32 %v725, %v726
    %728 = vmatprep.subr.mxu0 %v135
    %729 = vmatpush1.msra.mxu0 %v134
    %730 = vmatprep.subr.mxu0 %v138
    %731 = vmatpush1.msra.mxu0 %v137
    %732 = vmatprep.subr.mxu0 %v141
    %733 = vmatpush1.msra.mxu0 %v140
    %734 = vmatprep.subr.mxu0 %v144
    %735 = vmatpush1.msra.mxu0 %v143
    %736 = vmatprep.subr.mxu0 %v147
    %737 = vmatpush1.msra.mxu0 %v146
    %738 = vmatprep.subr.mxu0 %v150
    %739 = vmatpush1.msra.mxu0 %v149
    %740 = vmatprep.subr.mxu0 %v153
    %741 = vmatpush1.msra.mxu0 %v152
    %742 = vmatprep.subr.mxu0 %v156
    %743 = vmatpush1.msra.mxu0 %v155
    %744 = vmatprep.subr.mxu0 %v159
    %745 = vmatpush1.msra.mxu0 %v158
    %746 = vmatprep.subr.mxu0 %v162
    %747 = vmatpush1.msra.mxu0 %v161
    %748 = vmatprep.subr.mxu0 %v165
    %749 = vmatpush1.msra.mxu0 %v164
    %750 = vmatprep.subr.mxu0 %v168
    %751 = vmatpush1.msra.mxu0 %v167
    %752 = vmatprep.subr.mxu0 %v171
    %753 = vmatpush1.msra.mxu0 %v170
    %754 = vmatprep.subr.mxu0 %v174
    %755 = vmatpush1.msra.mxu0 %v173
    %756 = vmatprep.subr.mxu0 %v177
    %757 = vmatpush1.msra.mxu0 %v176
    %758 = vmatprep.subr.mxu0 %v180
    %759 = vmatpush1.msra.mxu0 %v179
    %760 = vmatprep.subr.mxu0 0.0
    %761 = vmatpush1.msra.mxu0 0.0
    %762 = vmatprep.subr.mxu0 0.0
    %763 = vmatpush1.msra.mxu0 0.0
    %764 = vmatprep.subr.mxu0 0.0
    %765 = vmatpush1.msra.mxu0 0.0
    %766 = vmatprep.subr.mxu0 0.0
    %767 = vmatpush1.msra.mxu0 0.0
    %768 = vmatprep.subr.mxu0 0.0
    %769 = vmatpush1.msra.mxu0 0.0
    %770 = vmatprep.subr.mxu0 0.0
    %771 = vmatpush1.msra.mxu0 0.0
    %772 = vmatprep.subr.mxu0 0.0
    %773 = vmatpush1.msra.mxu0 0.0
    %774 = vmatprep.subr.mxu0 0.0
    %775 = vmatpush1.msra.mxu0 0.0
    %776 = vmatprep.subr.mxu0 0.0
    %777 = vmatpush1.msra.mxu0 0.0
    %778 = vmatprep.subr.mxu0 0.0
    %779 = vmatpush1.msra.mxu0 0.0
    %780 = vmatprep.subr.mxu0 0.0
    %781 = vmatpush1.msra.mxu0 0.0
    %782 = vmatprep.subr.mxu0 0.0
    %783 = vmatpush1.msra.mxu0 0.0
    %784 = vmatprep.subr.mxu0 0.0
    %785 = vmatpush1.msra.mxu0 0.0
    %786 = vmatprep.subr.mxu0 0.0
    %787 = vmatpush1.msra.mxu0 0.0
    %788 = vmatprep.subr.mxu0 0.0
    %789 = vmatpush1.msra.mxu0 0.0
    %790 = vmatprep.subr.mxu0 0.0
    %791 = vmatpush1.msra.mxu0 0.0
    %792 = vmatprep.mubr.f32.mxu0 0.0
    %793 = vmatmul.mubr.f32.gmra.mrb[0].mxu0 %v727
    %v794 = vpop.f32.mrb[0].mxu0
    %v795 = vadd.f32 0.0, %v794
    %v796 = vpop.f32.mrb[0].mxu0
    %v797 = vadd.f32 0.0, %v796
    %798 = vdwg.mxu0
    %799 = vmatprep.subr.mxu0 0.0
    %800 = vmatpush1.msra.mxu0 %v136
    %801 = vmatprep.subr.mxu0 0.0
    %802 = vmatpush1.msra.mxu0 %v139
    %803 = vmatprep.subr.mxu0 0.0
    %804 = vmatpush1.msra.mxu0 %v142
    %805 = vmatprep.subr.mxu0 0.0
    %806 = vmatpush1.msra.mxu0 %v145
    %807 = vmatprep.subr.mxu0 0.0
    %808 = vmatpush1.msra.mxu0 %v148
    %809 = vmatprep.subr.mxu0 0.0
    %810 = vmatpush1.msra.mxu0 %v151
    %811 = vmatprep.subr.mxu0 0.0
    %812 = vmatpush1.msra.mxu0 %v154
    %813 = vmatprep.subr.mxu0 0.0
    %814 = vmatpush1.msra.mxu0 %v157
    %815 = vmatprep.subr.mxu0 0.0
    %816 = vmatpush1.msra.mxu0 %v160
    %817 = vmatprep.subr.mxu0 0.0
    %818 = vmatpush1.msra.mxu0 %v163
    %819 = vmatprep.subr.mxu0 0.0
    %820 = vmatpush1.msra.mxu0 %v166
    %821 = vmatprep.subr.mxu0 0.0
    %822 = vmatpush1.msra.mxu0 %v169
    %823 = vmatprep.subr.mxu0 0.0
    %824 = vmatpush1.msra.mxu0 %v172
    %825 = vmatprep.subr.mxu0 0.0
    %826 = vmatpush1.msra.mxu0 %v175
    %827 = vmatprep.subr.mxu0 0.0
    %828 = vmatpush1.msra.mxu0 %v178
    %829 = vmatprep.subr.mxu0 0.0
    %830 = vmatpush1.msra.mxu0 %v181
    %831 = vmatprep.subr.mxu0 0.0
    %832 = vmatpush1.msra.mxu0 0.0
    %833 = vmatprep.subr.mxu0 0.0
    %834 = vmatpush1.msra.mxu0 0.0
    %835 = vmatprep.subr.mxu0 0.0
    %836 = vmatpush1.msra.mxu0 0.0
    %837 = vmatprep.subr.mxu0 0.0
    %838 = vmatpush1.msra.mxu0 0.0
    %839 = vmatprep.subr.mxu0 0.0
    %840 = vmatpush1.msra.mxu0 0.0
    %841 = vmatprep.subr.mxu0 0.0
    %842 = vmatpush1.msra.mxu0 0.0
    %843 = vmatprep.subr.mxu0 0.0
    %844 = vmatpush1.msra.mxu0 0.0
    %845 = vmatprep.subr.mxu0 0.0
    %846 = vmatpush1.msra.mxu0 0.0
    %847 = vmatprep.subr.mxu0 0.0
    %848 = vmatpush1.msra.mxu0 0.0
    %849 = vmatprep.subr.mxu0 0.0
    %850 = vmatpush1.msra.mxu0 0.0
    %851 = vmatprep.subr.mxu0 0.0
    %852 = vmatpush1.msra.mxu0 0.0
    %853 = vmatprep.subr.mxu0 0.0
    %854 = vmatpush1.msra.mxu0 0.0
    %855 = vmatprep.subr.mxu0 0.0
    %856 = vmatpush1.msra.mxu0 0.0
    %857 = vmatprep.subr.mxu0 0.0
    %858 = vmatpush1.msra.mxu0 0.0
    %859 = vmatprep.subr.mxu0 0.0
    %860 = vmatpush1.msra.mxu0 0.0
    %861 = vmatprep.subr.mxu0 0.0
    %862 = vmatpush1.msra.mxu0 0.0
    %863 = vmatprep.mubr.f32.mxu0 0.0
    %864 = vmatmul.mubr.f32.gmra.mrb[0].mxu0 %v727
    %v865 = vpop.f32.mrb[0].mxu0
    %v866 = vadd.f32 0.0, %v865
    %v867 = vpop.f32.mrb[0].mxu0
    %868 = vdwg.mxu0
    %v871 = vcombine.low %v795, %v797
    %v873 = vunpack.c.l.s4 1966171168
    %v874 = vunpack.c.0.s8 %v873
    %v875 = vlaneseq
    %v876 = vshrl.u32 %v875, 7
    %v877 = vsub.s32 %v874, %v876
    %v878 = vrot.slane %v871, %v877
    %v880 = vunpack.c.l.s4 1966171168
    %v881 = vunpack.c.0.s8 %v880
    %v882 = vlaneseq
    %v883 = vshrl.u32 %v882, 7
    %v884 = vsub.s32 %v881, %v883
    %v885 = vrot.slane %v878, %v884
    %v887 = vadd.f32 %v93, %v885
    %v888 = vadd.f32 %v887, %v182
    %v889 = vxor.u32 %v888, 2147483648
    %v890 = vmul.f32 %v889, 1.442695
    %v891 = vpow.pop %v890
    %v892 = vadd.f32 %v891, 1.0
    %v893 = vrcp.pop %v892
    %v894 = vmul.f32 1.0, %v893
    %v895 = vadd.f32 %v866, %v183
    %v896 = vmul.f32 %v894, %v895
    %v898 = vrot.slane %v93, 2
    %v900 = vadd.f32 %v898, %v896
    %v901 = vtanh.pop %v900
    %v903 = vrot.slane %v894, 1
    %v905 = vsub.f32 1.0, %v903
    %v906 = vmul.f32 %v905, %v901
    %v907 = vmul.f32 %v903, %v727
    %v908 = vadd.f32 %v906, %v907
    %909 = vmatprep.subr.mxu0 %v135
    %910 = vmatpush1.msra.mxu0 %v134
    %911 = vmatprep.subr.mxu0 %v138
    %912 = vmatpush1.msra.mxu0 %v137
    %913 = vmatprep.subr.mxu0 %v141
    %914 = vmatpush1.msra.mxu0 %v140
    %915 = vmatprep.subr.mxu0 %v144
    %916 = vmatpush1.msra.mxu0 %v143
    %917 = vmatprep.subr.mxu0 %v147
    %918 = vmatpush1.msra.mxu0 %v146
    %919 = vmatprep.subr.mxu0 %v150
    %920 = vmatpush1.msra.mxu0 %v149
    %921 = vmatprep.subr.mxu0 %v153
    %922 = vmatpush1.msra.mxu0 %v152
    %923 = vmatprep.subr.mxu0 %v156
    %924 = vmatpush1.msra.mxu0 %v155
    %925 = vmatprep.subr.mxu0 %v159
    %926 = vmatpush1.msra.mxu0 %v158
    %927 = vmatprep.subr.mxu0 %v162
    %928 = vmatpush1.msra.mxu0 %v161
    %929 = vmatprep.subr.mxu0 %v165
    %930 = vmatpush1.msra.mxu0 %v164
    %931 = vmatprep.subr.mxu0 %v168
    %932 = vmatpush1.msra.mxu0 %v167
    %933 = vmatprep.subr.mxu0 %v171
    %934 = vmatpush1.msra.mxu0 %v170
    %935 = vmatprep.subr.mxu0 %v174
    %936 = vmatpush1.msra.mxu0 %v173
    %937 = vmatprep.subr.mxu0 %v177
    %938 = vmatpush1.msra.mxu0 %v176
    %939 = vmatprep.subr.mxu0 %v180
    %940 = vmatpush1.msra.mxu0 %v179
    %941 = vmatprep.subr.mxu0 0.0
    %942 = vmatpush1.msra.mxu0 0.0
    %943 = vmatprep.subr.mxu0 0.0
    %944 = vmatpush1.msra.mxu0 0.0
    %945 = vmatprep.subr.mxu0 0.0
    %946 = vmatpush1.msra.mxu0 0.0
    %947 = vmatprep.subr.mxu0 0.0
    %948 = vmatpush1.msra.mxu0 0.0
    %949 = vmatprep.subr.mxu0 0.0
    %950 = vmatpush1.msra.mxu0 0.0
    %951 = vmatprep.subr.mxu0 0.0
    %952 = vmatpush1.msra.mxu0 0.0
    %953 = vmatprep.subr.mxu0 0.0
    %954 = vmatpush1.msra.mxu0 0.0
    %955 = vmatprep.subr.mxu0 0.0
    %956 = vmatpush1.msra.mxu0 0.0
    %957 = vmatprep.subr.mxu0 0.0
    %958 = vmatpush1.msra.mxu0 0.0
    %959 = vmatprep.subr.mxu0 0.0
    %960 = vmatpush1.msra.mxu0 0.0
    %961 = vmatprep.subr.mxu0 0.0
    %962 = vmatpush1.msra.mxu0 0.0
    %963 = vmatprep.subr.mxu0 0.0
    %964 = vmatpush1.msra.mxu0 0.0
    %965 = vmatprep.subr.mxu0 0.0
    %966 = vmatpush1.msra.mxu0 0.0
    %967 = vmatprep.subr.mxu0 0.0
    %968 = vmatpush1.msra.mxu0 0.0
    %969 = vmatprep.subr.mxu0 0.0
    %970 = vmatpush1.msra.mxu0 0.0
    %971 = vmatprep.subr.mxu0 0.0
    %972 = vmatpush1.msra.mxu0 0.0
    %973 = vmatprep.mubr.f32.mxu0 0.0
    %974 = vmatmul.mubr.f32.gmra.mrb[0].mxu0 %v908
    %v975 = vpop.f32.mrb[0].mxu0
    %v976 = vadd.f32 0.0, %v975
    %v977 = vpop.f32.mrb[0].mxu0
    %v978 = vadd.f32 0.0, %v977
    %979 = vdwg.mxu0
    %980 = vmatprep.subr.mxu0 0.0
    %981 = vmatpush1.msra.mxu0 %v136
    %982 = vmatprep.subr.mxu0 0.0
    %983 = vmatpush1.msra.mxu0 %v139
    %984 = vmatprep.subr.mxu0 0.0
    %985 = vmatpush1.msra.mxu0 %v142
    %986 = vmatprep.subr.mxu0 0.0
    %987 = vmatpush1.msra.mxu0 %v145
    %988 = vmatprep.subr.mxu0 0.0
    %989 = vmatpush1.msra.mxu0 %v148
    %990 = vmatprep.subr.mxu0 0.0
    %991 = vmatpush1.msra.mxu0 %v151
    %992 = vmatprep.subr.mxu0 0.0
    %993 = vmatpush1.msra.mxu0 %v154
    %994 = vmatprep.subr.mxu0 0.0
    %995 = vmatpush1.msra.mxu0 %v157
    %996 = vmatprep.subr.mxu0 0.0
    %997 = vmatpush1.msra.mxu0 %v160
    %998 = vmatprep.subr.mxu0 0.0
    %999 = vmatpush1.msra.mxu0 %v163
    %1000 = vmatprep.subr.mxu0 0.0
    %1001 = vmatpush1.msra.mxu0 %v166
    %1002 = vmatprep.subr.mxu0 0.0
    %1003 = vmatpush1.msra.mxu0 %v169
    %1004 = vmatprep.subr.mxu0 0.0
    %1005 = vmatpush1.msra.mxu0 %v172
    %1006 = vmatprep.subr.mxu0 0.0
    %1007 = vmatpush1.msra.mxu0 %v175
    %1008 = vmatprep.subr.mxu0 0.0
    %1009 = vmatpush1.msra.mxu0 %v178
    %1010 = vmatprep.subr.mxu0 0.0
    %1011 = vmatpush1.msra.mxu0 %v181
    %1012 = vmatprep.subr.mxu0 0.0
    %1013 = vmatpush1.msra.mxu0 0.0
    %1014 = vmatprep.subr.mxu0 0.0
    %1015 = vmatpush1.msra.mxu0 0.0
    %1016 = vmatprep.subr.mxu0 0.0
    %1017 = vmatpush1.msra.mxu0 0.0
    %1018 = vmatprep.subr.mxu0 0.0
    %1019 = vmatpush1.msra.mxu0 0.0
    %1020 = vmatprep.subr.mxu0 0.0
    %1021 = vmatpush1.msra.mxu0 0.0
    %1022 = vmatprep.subr.mxu0 0.0
    %1023 = vmatpush1.msra.mxu0 0.0
    %1024 = vmatprep.subr.mxu0 0.0
    %1025 = vmatpush1.msra.mxu0 0.0
    %1026 = vmatprep.subr.mxu0 0.0
    %1027 = vmatpush1.msra.mxu0 0.0
    %1028 = vmatprep.subr.mxu0 0.0
    %1029 = vmatpush1.msra.mxu0 0.0
    %1030 = vmatprep.subr.mxu0 0.0
    %1031 = vmatpush1.msra.mxu0 0.0
    %1032 = vmatprep.subr.mxu0 0.0
    %1033 = vmatpush1.msra.mxu0 0.0
    %1034 = vmatprep.subr.mxu0 0.0
    %1035 = vmatpush1.msra.mxu0 0.0
    %1036 = vmatprep.subr.mxu0 0.0
    %1037 = vmatpush1.msra.mxu0 0.0
    %1038 = vmatprep.subr.mxu0 0.0
    %1039 = vmatpush1.msra.mxu0 0.0
    %1040 = vmatprep.subr.mxu0 0.0
    %1041 = vmatpush1.msra.mxu0 0.0
    %1042 = vmatprep.subr.mxu0 0.0
    %1043 = vmatpush1.msra.mxu0 0.0
    %1044 = vmatprep.mubr.f32.mxu0 0.0
    %1045 = vmatmul.mubr.f32.gmra.mrb[0].mxu0 %v908
    %v1046 = vpop.f32.mrb[0].mxu0
    %v1047 = vadd.f32 0.0, %v1046
    %v1048 = vpop.f32.mrb[0].mxu0
    %1049 = vdwg.mxu0
    %v1052 = vcombine.low %v976, %v978
    %v1054 = vunpack.c.l.s4 1966171168
    %v1055 = vunpack.c.0.s8 %v1054
    %v1056 = vlaneseq
    %v1057 = vshrl.u32 %v1056, 7
    %v1058 = vsub.s32 %v1055, %v1057
    %v1059 = vrot.slane %v1052, %v1058
    %v1061 = vunpack.c.l.s4 1966171168
    %v1062 = vunpack.c.0.s8 %v1061
    %v1063 = vlaneseq
    %v1064 = vshrl.u32 %v1063, 7
    %v1065 = vsub.s32 %v1062, %v1064
    %v1066 = vrot.slane %v1059, %v1065
    %v1068 = vadd.f32 %v103, %v1066
    %v1069 = vadd.f32 %v1068, %v182
    %v1070 = vxor.u32 %v1069, 2147483648
    %v1071 = vmul.f32 %v1070, 1.442695
    %v1072 = vpow.pop %v1071
    %v1073 = vadd.f32 %v1072, 1.0
    %v1074 = vrcp.pop %v1073
    %v1075 = vmul.f32 1.0, %v1074
    %v1076 = vadd.f32 %v1047, %v183
    %v1077 = vmul.f32 %v1075, %v1076
    %v1079 = vrot.slane %v103, 2
    %v1081 = vadd.f32 %v1079, %v1077
    %v1082 = vtanh.pop %v1081
    %v1084 = vrot.slane %v1075, 1
    %v1086 = vsub.f32 1.0, %v1084
    %v1087 = vmul.f32 %v1086, %v1082
    %v1088 = vmul.f32 %v1084, %v908
    %v1089 = vadd.f32 %v1087, %v1088
    %1090 = vmatprep.subr.mxu0 %v135
    %1091 = vmatpush1.msra.mxu0 %v134
    %1092 = vmatprep.subr.mxu0 %v138
    %1093 = vmatpush1.msra.mxu0 %v137
    %1094 = vmatprep.subr.mxu0 %v141
    %1095 = vmatpush1.msra.mxu0 %v140
    %1096 = vmatprep.subr.mxu0 %v144
    %1097 = vmatpush1.msra.mxu0 %v143
    %1098 = vmatprep.subr.mxu0 %v147
    %1099 = vmatpush1.msra.mxu0 %v146
    %1100 = vmatprep.subr.mxu0 %v150
    %1101 = vmatpush1.msra.mxu0 %v149
    %1102 = vmatprep.subr.mxu0 %v153
    %1103 = vmatpush1.msra.mxu0 %v152
    %1104 = vmatprep.subr.mxu0 %v156
    %1105 = vmatpush1.msra.mxu0 %v155
    %1106 = vmatprep.subr.mxu0 %v159
    %1107 = vmatpush1.msra.mxu0 %v158
    %1108 = vmatprep.subr.mxu0 %v162
    %1109 = vmatpush1.msra.mxu0 %v161
    %1110 = vmatprep.subr.mxu0 %v165
    %1111 = vmatpush1.msra.mxu0 %v164
    %1112 = vmatprep.subr.mxu0 %v168
    %1113 = vmatpush1.msra.mxu0 %v167
    %1114 = vmatprep.subr.mxu0 %v171
    %1115 = vmatpush1.msra.mxu0 %v170
    %1116 = vmatprep.subr.mxu0 %v174
    %1117 = vmatpush1.msra.mxu0 %v173
    %1118 = vmatprep.subr.mxu0 %v177
    %1119 = vmatpush1.msra.mxu0 %v176
    %1120 = vmatprep.subr.mxu0 %v180
    %1121 = vmatpush1.msra.mxu0 %v179
    %1122 = vmatprep.subr.mxu0 0.0
    %1123 = vmatpush1.msra.mxu0 0.0
    %1124 = vmatprep.subr.mxu0 0.0
    %1125 = vmatpush1.msra.mxu0 0.0
    %1126 = vmatprep.subr.mxu0 0.0
    %1127 = vmatpush1.msra.mxu0 0.0
    %1128 = vmatprep.subr.mxu0 0.0
    %1129 = vmatpush1.msra.mxu0 0.0
    %1130 = vmatprep.subr.mxu0 0.0
    %1131 = vmatpush1.msra.mxu0 0.0
    %1132 = vmatprep.subr.mxu0 0.0
    %1133 = vmatpush1.msra.mxu0 0.0
    %1134 = vmatprep.subr.mxu0 0.0
    %1135 = vmatpush1.msra.mxu0 0.0
    %1136 = vmatprep.subr.mxu0 0.0
    %1137 = vmatpush1.msra.mxu0 0.0
    %1138 = vmatprep.subr.mxu0 0.0
    %1139 = vmatpush1.msra.mxu0 0.0
    %1140 = vmatprep.subr.mxu0 0.0
    %1141 = vmatpush1.msra.mxu0 0.0
    %1142 = vmatprep.subr.mxu0 0.0
    %1143 = vmatpush1.msra.mxu0 0.0
    %1144 = vmatprep.subr.mxu0 0.0
    %1145 = vmatpush1.msra.mxu0 0.0
    %1146 = vmatprep.subr.mxu0 0.0
    %1147 = vmatpush1.msra.mxu0 0.0
    %1148 = vmatprep.subr.mxu0 0.0
    %1149 = vmatpush1.msra.mxu0 0.0
    %1150 = vmatprep.subr.mxu0 0.0
    %1151 = vmatpush1.msra.mxu0 0.0
    %1152 = vmatprep.subr.mxu0 0.0
    %1153 = vmatpush1.msra.mxu0 0.0
    %1154 = vmatprep.mubr.f32.mxu0 0.0
    %1155 = vmatmul.mubr.f32.gmra.mrb[0].mxu0 %v1089
    %v1156 = vpop.f32.mrb[0].mxu0
    %v1157 = vadd.f32 0.0, %v1156
    %v1158 = vpop.f32.mrb[0].mxu0
    %v1159 = vadd.f32 0.0, %v1158
    %1160 = vdwg.mxu0
    %1161 = vmatprep.subr.mxu0 0.0
    %1162 = vmatpush1.msra.mxu0 %v136
    %1163 = vmatprep.subr.mxu0 0.0
    %1164 = vmatpush1.msra.mxu0 %v139
    %1165 = vmatprep.subr.mxu0 0.0
    %1166 = vmatpush1.msra.mxu0 %v142
    %1167 = vmatprep.subr.mxu0 0.0
    %1168 = vmatpush1.msra.mxu0 %v145
    %1169 = vmatprep.subr.mxu0 0.0
    %1170 = vmatpush1.msra.mxu0 %v148
    %1171 = vmatprep.subr.mxu0 0.0
    %1172 = vmatpush1.msra.mxu0 %v151
    %1173 = vmatprep.subr.mxu0 0.0
    %1174 = vmatpush1.msra.mxu0 %v154
    %1175 = vmatprep.subr.mxu0 0.0
    %1176 = vmatpush1.msra.mxu0 %v157
    %1177 = vmatprep.subr.mxu0 0.0
    %1178 = vmatpush1.msra.mxu0 %v160
    %1179 = vmatprep.subr.mxu0 0.0
    %1180 = vmatpush1.msra.mxu0 %v163
    %1181 = vmatprep.subr.mxu0 0.0
    %1182 = vmatpush1.msra.mxu0 %v166
    %1183 = vmatprep.subr.mxu0 0.0
    %1184 = vmatpush1.msra.mxu0 %v169
    %1185 = vmatprep.subr.mxu0 0.0
    %1186 = vmatpush1.msra.mxu0 %v172
    %1187 = vmatprep.subr.mxu0 0.0
    %1188 = vmatpush1.msra.mxu0 %v175
    %1189 = vmatprep.subr.mxu0 0.0
    %1190 = vmatpush1.msra.mxu0 %v178
    %1191 = vmatprep.subr.mxu0 0.0
    %1192 = vmatpush1.msra.mxu0 %v181
    %1193 = vmatprep.subr.mxu0 0.0
    %1194 = vmatpush1.msra.mxu0 0.0
    %1195 = vmatprep.subr.mxu0 0.0
    %1196 = vmatpush1.msra.mxu0 0.0
    %1197 = vmatprep.subr.mxu0 0.0
    %1198 = vmatpush1.msra.mxu0 0.0
    %1199 = vmatprep.subr.mxu0 0.0
    %1200 = vmatpush1.msra.mxu0 0.0
    %1201 = vmatprep.subr.mxu0 0.0
    %1202 = vmatpush1.msra.mxu0 0.0
    %1203 = vmatprep.subr.mxu0 0.0
    %1204 = vmatpush1.msra.mxu0 0.0
    %1205 = vmatprep.subr.mxu0 0.0
    %1206 = vmatpush1.msra.mxu0 0.0
    %1207 = vmatprep.subr.mxu0 0.0
    %1208 = vmatpush1.msra.mxu0 0.0
    %1209 = vmatprep.subr.mxu0 0.0
    %1210 = vmatpush1.msra.mxu0 0.0
    %1211 = vmatprep.subr.mxu0 0.0
    %1212 = vmatpush1.msra.mxu0 0.0
    %1213 = vmatprep.subr.mxu0 0.0
    %1214 = vmatpush1.msra.mxu0 0.0
    %1215 = vmatprep.subr.mxu0 0.0
    %1216 = vmatpush1.msra.mxu0 0.0
    %1217 = vmatprep.subr.mxu0 0.0
    %1218 = vmatpush1.msra.mxu0 0.0
    %1219 = vmatprep.subr.mxu0 0.0
    %1220 = vmatpush1.msra.mxu0 0.0
    %1221 = vmatprep.subr.mxu0 0.0
    %1222 = vmatpush1.msra.mxu0 0.0
    %1223 = vmatprep.subr.mxu0 0.0
    %1224 = vmatpush1.msra.mxu0 0.0
    %1225 = vmatprep.mubr.f32.mxu0 0.0
    %1226 = vmatmul.mubr.f32.gmra.mrb[0].mxu0 %v1089
    %v1227 = vpop.f32.mrb[0].mxu0
    %v1228 = vadd.f32 0.0, %v1227
    %v1229 = vpop.f32.mrb[0].mxu0
    %1230 = vdwg.mxu0
    %v1233 = vcombine.low %v1157, %v1159
    %v1235 = vunpack.c.l.s4 1966171168
    %v1236 = vunpack.c.0.s8 %v1235
    %v1237 = vlaneseq
    %v1238 = vshrl.u32 %v1237, 7
    %v1239 = vsub.s32 %v1236, %v1238
    %v1240 = vrot.slane %v1233, %v1239
    %v1242 = vunpack.c.l.s4 1966171168
    %v1243 = vunpack.c.0.s8 %v1242
    %v1244 = vlaneseq
    %v1245 = vshrl.u32 %v1244, 7
    %v1246 = vsub.s32 %v1243, %v1245
    %v1247 = vrot.slane %v1240, %v1246
    %v1249 = vadd.f32 %v113, %v1247
    %v1250 = vadd.f32 %v1249, %v182
    %v1251 = vxor.u32 %v1250, 2147483648
    %v1252 = vmul.f32 %v1251, 1.442695
    %v1253 = vpow.pop %v1252
    %v1254 = vadd.f32 %v1253, 1.0
    %v1255 = vrcp.pop %v1254
    %v1256 = vmul.f32 1.0, %v1255
    %v1257 = vadd.f32 %v1228, %v183
    %v1258 = vmul.f32 %v1256, %v1257
    %v1260 = vrot.slane %v113, 2
    %v1262 = vadd.f32 %v1260, %v1258
    %v1263 = vtanh.pop %v1262
    %v1265 = vrot.slane %v1256, 1
    %v1267 = vsub.f32 1.0, %v1265
    %v1268 = vmul.f32 %v1267, %v1263
    %v1269 = vmul.f32 %v1265, %v1089
    %v1270 = vadd.f32 %v1268, %v1269
    %1271 = vmatprep.subr.mxu0 %v135
    %1272 = vmatpush1.msra.mxu0 %v134
    %1273 = vmatprep.subr.mxu0 %v138
    %1274 = vmatpush1.msra.mxu0 %v137
    %1275 = vmatprep.subr.mxu0 %v141
    %1276 = vmatpush1.msra.mxu0 %v140
    %1277 = vmatprep.subr.mxu0 %v144
    %1278 = vmatpush1.msra.mxu0 %v143
    %1279 = vmatprep.subr.mxu0 %v147
    %1280 = vmatpush1.msra.mxu0 %v146
    %1281 = vmatprep.subr.mxu0 %v150
    %1282 = vmatpush1.msra.mxu0 %v149
    %1283 = vmatprep.subr.mxu0 %v153
    %1284 = vmatpush1.msra.mxu0 %v152
    %1285 = vmatprep.subr.mxu0 %v156
    %1286 = vmatpush1.msra.mxu0 %v155
    %1287 = vmatprep.subr.mxu0 %v159
    %1288 = vmatpush1.msra.mxu0 %v158
    %1289 = vmatprep.subr.mxu0 %v162
    %1290 = vmatpush1.msra.mxu0 %v161
    %1291 = vmatprep.subr.mxu0 %v165
    %1292 = vmatpush1.msra.mxu0 %v164
    %1293 = vmatprep.subr.mxu0 %v168
    %1294 = vmatpush1.msra.mxu0 %v167
    %1295 = vmatprep.subr.mxu0 %v171
    %1296 = vmatpush1.msra.mxu0 %v170
    %1297 = vmatprep.subr.mxu0 %v174
    %1298 = vmatpush1.msra.mxu0 %v173
    %1299 = vmatprep.subr.mxu0 %v177
    %1300 = vmatpush1.msra.mxu0 %v176
    %1301 = vmatprep.subr.mxu0 %v180
    %1302 = vmatpush1.msra.mxu0 %v179
    %1303 = vmatprep.subr.mxu0 0.0
    %1304 = vmatpush1.msra.mxu0 0.0
    %1305 = vmatprep.subr.mxu0 0.0
    %1306 = vmatpush1.msra.mxu0 0.0
    %1307 = vmatprep.subr.mxu0 0.0
    %1308 = vmatpush1.msra.mxu0 0.0
    %1309 = vmatprep.subr.mxu0 0.0
    %1310 = vmatpush1.msra.mxu0 0.0
    %1311 = vmatprep.subr.mxu0 0.0
    %1312 = vmatpush1.msra.mxu0 0.0
    %1313 = vmatprep.subr.mxu0 0.0
    %1314 = vmatpush1.msra.mxu0 0.0
    %1315 = vmatprep.subr.mxu0 0.0
    %1316 = vmatpush1.msra.mxu0 0.0
    %1317 = vmatprep.subr.mxu0 0.0
    %1318 = vmatpush1.msra.mxu0 0.0
    %1319 = vmatprep.subr.mxu0 0.0
    %1320 = vmatpush1.msra.mxu0 0.0
    %1321 = vmatprep.subr.mxu0 0.0
    %1322 = vmatpush1.msra.mxu0 0.0
    %1323 = vmatprep.subr.mxu0 0.0
    %1324 = vmatpush1.msra.mxu0 0.0
    %1325 = vmatprep.subr.mxu0 0.0
    %1326 = vmatpush1.msra.mxu0 0.0
    %1327 = vmatprep.subr.mxu0 0.0
    %1328 = vmatpush1.msra.mxu0 0.0
    %1329 = vmatprep.subr.mxu0 0.0
    %1330 = vmatpush1.msra.mxu0 0.0
    %1331 = vmatprep.subr.mxu0 0.0
    %1332 = vmatpush1.msra.mxu0 0.0
    %1333 = vmatprep.subr.mxu0 0.0
    %1334 = vmatpush1.msra.mxu0 0.0
    %1335 = vmatprep.mubr.f32.mxu0 0.0
    %1336 = vmatmul.mubr.f32.gmra.mrb[0].mxu0 %v1270
    %v1337 = vpop.f32.mrb[0].mxu0
    %v1338 = vadd.f32 0.0, %v1337
    %v1339 = vpop.f32.mrb[0].mxu0
    %v1340 = vadd.f32 0.0, %v1339
    %1341 = vdwg.mxu0
    %1342 = vmatprep.subr.mxu0 0.0
    %1343 = vmatpush1.msra.mxu0 %v136
    %1344 = vmatprep.subr.mxu0 0.0
    %1345 = vmatpush1.msra.mxu0 %v139
    %1346 = vmatprep.subr.mxu0 0.0
    %1347 = vmatpush1.msra.mxu0 %v142
    %1348 = vmatprep.subr.mxu0 0.0
    %1349 = vmatpush1.msra.mxu0 %v145
    %1350 = vmatprep.subr.mxu0 0.0
    %1351 = vmatpush1.msra.mxu0 %v148
    %1352 = vmatprep.subr.mxu0 0.0
    %1353 = vmatpush1.msra.mxu0 %v151
    %1354 = vmatprep.subr.mxu0 0.0
    %1355 = vmatpush1.msra.mxu0 %v154
    %1356 = vmatprep.subr.mxu0 0.0
    %1357 = vmatpush1.msra.mxu0 %v157
    %1358 = vmatprep.subr.mxu0 0.0
    %1359 = vmatpush1.msra.mxu0 %v160
    %1360 = vmatprep.subr.mxu0 0.0
    %1361 = vmatpush1.msra.mxu0 %v163
    %1362 = vmatprep.subr.mxu0 0.0
    %1363 = vmatpush1.msra.mxu0 %v166
    %1364 = vmatprep.subr.mxu0 0.0
    %1365 = vmatpush1.msra.mxu0 %v169
    %1366 = vmatprep.subr.mxu0 0.0
    %1367 = vmatpush1.msra.mxu0 %v172
    %1368 = vmatprep.subr.mxu0 0.0
    %1369 = vmatpush1.msra.mxu0 %v175
    %1370 = vmatprep.subr.mxu0 0.0
    %1371 = vmatpush1.msra.mxu0 %v178
    %1372 = vmatprep.subr.mxu0 0.0
    %1373 = vmatpush1.msra.mxu0 %v181
    %1374 = vmatprep.subr.mxu0 0.0
    %1375 = vmatpush1.msra.mxu0 0.0
    %1376 = vmatprep.subr.mxu0 0.0
    %1377 = vmatpush1.msra.mxu0 0.0
    %1378 = vmatprep.subr.mxu0 0.0
    %1379 = vmatpush1.msra.mxu0 0.0
    %1380 = vmatprep.subr.mxu0 0.0
    %1381 = vmatpush1.msra.mxu0 0.0
    %1382 = vmatprep.subr.mxu0 0.0
    %1383 = vmatpush1.msra.mxu0 0.0
    %1384 = vmatprep.subr.mxu0 0.0
    %1385 = vmatpush1.msra.mxu0 0.0
    %1386 = vmatprep.subr.mxu0 0.0
    %1387 = vmatpush1.msra.mxu0 0.0
    %1388 = vmatprep.subr.mxu0 0.0
    %1389 = vmatpush1.msra.mxu0 0.0
    %1390 = vmatprep.subr.mxu0 0.0
    %1391 = vmatpush1.msra.mxu0 0.0
    %1392 = vmatprep.subr.mxu0 0.0
    %1393 = vmatpush1.msra.mxu0 0.0
    %1394 = vmatprep.subr.mxu0 0.0
    %1395 = vmatpush1.msra.mxu0 0.0
    %1396 = vmatprep.subr.mxu0 0.0
    %1397 = vmatpush1.msra.mxu0 0.0
    %1398 = vmatprep.subr.mxu0 0.0
    %1399 = vmatpush1.msra.mxu0 0.0
    %1400 = vmatprep.subr.mxu0 0.0
    %1401 = vmatpush1.msra.mxu0 0.0
    %1402 = vmatprep.subr.mxu0 0.0
    %1403 = vmatpush1.msra.mxu0 0.0
    %1404 = vmatprep.subr.mxu0 0.0
    %1405 = vmatpush1.msra.mxu0 0.0
    %1406 = vmatprep.mubr.f32.mxu0 0.0
    %1407 = vmatmul.mubr.f32.gmra.mrb[0].mxu0 %v1270
    %v1408 = vpop.f32.mrb[0].mxu0
    %v1409 = vadd.f32 0.0, %v1408
    %v1410 = vpop.f32.mrb[0].mxu0
    %1411 = vdwg.mxu0
    %v1414 = vcombine.low %v1338, %v1340
    %v1416 = vunpack.c.l.s4 1966171168
    %v1417 = vunpack.c.0.s8 %v1416
    %v1418 = vlaneseq
    %v1419 = vshrl.u32 %v1418, 7
    %v1420 = vsub.s32 %v1417, %v1419
    %v1421 = vrot.slane %v1414, %v1420
    %v1423 = vunpack.c.l.s4 1966171168
    %v1424 = vunpack.c.0.s8 %v1423
    %v1425 = vlaneseq
    %v1426 = vshrl.u32 %v1425, 7
    %v1427 = vsub.s32 %v1424, %v1426
    %v1428 = vrot.slane %v1421, %v1427
    %v1430 = vadd.f32 %v123, %v1428
    %v1431 = vadd.f32 %v1430, %v182
    %v1432 = vxor.u32 %v1431, 2147483648
    %v1433 = vmul.f32 %v1432, 1.442695
    %v1434 = vpow.pop %v1433
    %v1435 = vadd.f32 %v1434, 1.0
    %v1436 = vrcp.pop %v1435
    %v1437 = vmul.f32 1.0, %v1436
    %v1438 = vadd.f32 %v1409, %v183
    %v1439 = vmul.f32 %v1437, %v1438
    %v1441 = vrot.slane %v123, 2
    %v1443 = vadd.f32 %v1441, %v1439
    %v1444 = vtanh.pop %v1443
    %v1446 = vrot.slane %v1437, 1
    %v1448 = vsub.f32 1.0, %v1446
    %v1449 = vmul.f32 %v1448, %v1444
    %v1450 = vmul.f32 %v1446, %v1270
    %v1451 = vadd.f32 %v1449, %v1450
    %1452 = vmatprep.subr.mxu0 %v135
    %1453 = vmatpush1.msra.mxu0 %v134
    %1454 = vmatprep.subr.mxu0 %v138
    %1455 = vmatpush1.msra.mxu0 %v137
    %1456 = vmatprep.subr.mxu0 %v141
    %1457 = vmatpush1.msra.mxu0 %v140
    %1458 = vmatprep.subr.mxu0 %v144
    %1459 = vmatpush1.msra.mxu0 %v143
    %1460 = vmatprep.subr.mxu0 %v147
    %1461 = vmatpush1.msra.mxu0 %v146
    %1462 = vmatprep.subr.mxu0 %v150
    %1463 = vmatpush1.msra.mxu0 %v149
    %1464 = vmatprep.subr.mxu0 %v153
    %1465 = vmatpush1.msra.mxu0 %v152
    %1466 = vmatprep.subr.mxu0 %v156
    %1467 = vmatpush1.msra.mxu0 %v155
    %1468 = vmatprep.subr.mxu0 %v159
    %1469 = vmatpush1.msra.mxu0 %v158
    %1470 = vmatprep.subr.mxu0 %v162
    %1471 = vmatpush1.msra.mxu0 %v161
    %1472 = vmatprep.subr.mxu0 %v165
    %1473 = vmatpush1.msra.mxu0 %v164
    %1474 = vmatprep.subr.mxu0 %v168
    %1475 = vmatpush1.msra.mxu0 %v167
    %1476 = vmatprep.subr.mxu0 %v171
    %1477 = vmatpush1.msra.mxu0 %v170
    %1478 = vmatprep.subr.mxu0 %v174
    %1479 = vmatpush1.msra.mxu0 %v173
    %1480 = vmatprep.subr.mxu0 %v177
    %1481 = vmatpush1.msra.mxu0 %v176
    %1482 = vmatprep.subr.mxu0 %v180
    %1483 = vmatpush1.msra.mxu0 %v179
    %1484 = vmatprep.subr.mxu0 0.0
    %1485 = vmatpush1.msra.mxu0 0.0
    %1486 = vmatprep.subr.mxu0 0.0
    %1487 = vmatpush1.msra.mxu0 0.0
    %1488 = vmatprep.subr.mxu0 0.0
    %1489 = vmatpush1.msra.mxu0 0.0
    %1490 = vmatprep.subr.mxu0 0.0
    %1491 = vmatpush1.msra.mxu0 0.0
    %1492 = vmatprep.subr.mxu0 0.0
    %1493 = vmatpush1.msra.mxu0 0.0
    %1494 = vmatprep.subr.mxu0 0.0
    %1495 = vmatpush1.msra.mxu0 0.0
    %1496 = vmatprep.subr.mxu0 0.0
    %1497 = vmatpush1.msra.mxu0 0.0
    %1498 = vmatprep.subr.mxu0 0.0
    %1499 = vmatpush1.msra.mxu0 0.0
    %1500 = vmatprep.subr.mxu0 0.0
    %1501 = vmatpush1.msra.mxu0 0.0
    %1502 = vmatprep.subr.mxu0 0.0
    %1503 = vmatpush1.msra.mxu0 0.0
    %1504 = vmatprep.subr.mxu0 0.0
    %1505 = vmatpush1.msra.mxu0 0.0
    %1506 = vmatprep.subr.mxu0 0.0
    %1507 = vmatpush1.msra.mxu0 0.0
    %1508 = vmatprep.subr.mxu0 0.0
    %1509 = vmatpush1.msra.mxu0 0.0
    %1510 = vmatprep.subr.mxu0 0.0
    %1511 = vmatpush1.msra.mxu0 0.0
    %1512 = vmatprep.subr.mxu0 0.0
    %1513 = vmatpush1.msra.mxu0 0.0
    %1514 = vmatprep.subr.mxu0 0.0
    %1515 = vmatpush1.msra.mxu0 0.0
    %1516 = vmatprep.mubr.f32.mxu0 0.0
    %1517 = vmatmul.mubr.f32.gmra.mrb[0].mxu0 %v1451
    %v1518 = vpop.f32.mrb[0].mxu0
    %v1519 = vadd.f32 0.0, %v1518
    %v1520 = vpop.f32.mrb[0].mxu0
    %v1521 = vadd.f32 0.0, %v1520
    %1522 = vdwg.mxu0
    %1523 = vmatprep.subr.mxu0 0.0
    %1524 = vmatpush1.msra.mxu0 %v136
    %1525 = vmatprep.subr.mxu0 0.0
    %1526 = vmatpush1.msra.mxu0 %v139
    %1527 = vmatprep.subr.mxu0 0.0
    %1528 = vmatpush1.msra.mxu0 %v142
    %1529 = vmatprep.subr.mxu0 0.0
    %1530 = vmatpush1.msra.mxu0 %v145
    %1531 = vmatprep.subr.mxu0 0.0
    %1532 = vmatpush1.msra.mxu0 %v148
    %1533 = vmatprep.subr.mxu0 0.0
    %1534 = vmatpush1.msra.mxu0 %v151
    %1535 = vmatprep.subr.mxu0 0.0
    %1536 = vmatpush1.msra.mxu0 %v154
    %1537 = vmatprep.subr.mxu0 0.0
    %1538 = vmatpush1.msra.mxu0 %v157
    %1539 = vmatprep.subr.mxu0 0.0
    %1540 = vmatpush1.msra.mxu0 %v160
    %1541 = vmatprep.subr.mxu0 0.0
    %1542 = vmatpush1.msra.mxu0 %v163
    %1543 = vmatprep.subr.mxu0 0.0
    %1544 = vmatpush1.msra.mxu0 %v166
    %1545 = vmatprep.subr.mxu0 0.0
    %1546 = vmatpush1.msra.mxu0 %v169
    %1547 = vmatprep.subr.mxu0 0.0
    %1548 = vmatpush1.msra.mxu0 %v172
    %1549 = vmatprep.subr.mxu0 0.0
    %1550 = vmatpush1.msra.mxu0 %v175
    %1551 = vmatprep.subr.mxu0 0.0
    %1552 = vmatpush1.msra.mxu0 %v178
    %1553 = vmatprep.subr.mxu0 0.0
    %1554 = vmatpush1.msra.mxu0 %v181
    %1555 = vmatprep.subr.mxu0 0.0
    %1556 = vmatpush1.msra.mxu0 0.0
    %1557 = vmatprep.subr.mxu0 0.0
    %1558 = vmatpush1.msra.mxu0 0.0
    %1559 = vmatprep.subr.mxu0 0.0
    %1560 = vmatpush1.msra.mxu0 0.0
    %1561 = vmatprep.subr.mxu0 0.0
    %1562 = vmatpush1.msra.mxu0 0.0
    %1563 = vmatprep.subr.mxu0 0.0
    %1564 = vmatpush1.msra.mxu0 0.0
    %1565 = vmatprep.subr.mxu0 0.0
    %1566 = vmatpush1.msra.mxu0 0.0
    %1567 = vmatprep.subr.mxu0 0.0
    %1568 = vmatpush1.msra.mxu0 0.0
    %1569 = vmatprep.subr.mxu0 0.0
    %1570 = vmatpush1.msra.mxu0 0.0
    %1571 = vmatprep.subr.mxu0 0.0
    %1572 = vmatpush1.msra.mxu0 0.0
    %1573 = vmatprep.subr.mxu0 0.0
    %1574 = vmatpush1.msra.mxu0 0.0
    %1575 = vmatprep.subr.mxu0 0.0
    %1576 = vmatpush1.msra.mxu0 0.0
    %1577 = vmatprep.subr.mxu0 0.0
    %1578 = vmatpush1.msra.mxu0 0.0
    %1579 = vmatprep.subr.mxu0 0.0
    %1580 = vmatpush1.msra.mxu0 0.0
    %1581 = vmatprep.subr.mxu0 0.0
    %1582 = vmatpush1.msra.mxu0 0.0
    %1583 = vmatprep.subr.mxu0 0.0
    %1584 = vmatpush1.msra.mxu0 0.0
    %1585 = vmatprep.subr.mxu0 0.0
    %1586 = vmatpush1.msra.mxu0 0.0
    %1587 = vmatprep.mubr.f32.mxu0 0.0
    %1588 = vmatmul.mubr.f32.gmra.mrb[0].mxu0 %v1451
    %v1589 = vpop.f32.mrb[0].mxu0
    %v1590 = vadd.f32 0.0, %v1589
    %v1591 = vpop.f32.mrb[0].mxu0
    %1592 = vdwg.mxu0
    %v1595 = vcombine.low %v1519, %v1521
    %v1597 = vunpack.c.l.s4 1966171168
    %v1598 = vunpack.c.0.s8 %v1597
    %v1599 = vlaneseq
    %v1600 = vshrl.u32 %v1599, 7
    %v1601 = vsub.s32 %v1598, %v1600
    %v1602 = vrot.slane %v1595, %v1601
    %v1604 = vunpack.c.l.s4 1966171168
    %v1605 = vunpack.c.0.s8 %v1604
    %v1606 = vlaneseq
    %v1607 = vshrl.u32 %v1606, 7
    %v1608 = vsub.s32 %v1605, %v1607
    %v1609 = vrot.slane %v1602, %v1608
    %v1611 = vadd.f32 %v133, %v1609
    %v1612 = vadd.f32 %v1611, %v182
    %v1613 = vxor.u32 %v1612, 2147483648
    %v1614 = vmul.f32 %v1613, 1.442695
    %v1615 = vpow.pop %v1614
    %v1616 = vadd.f32 %v1615, 1.0
    %v1617 = vrcp.pop %v1616
    %v1618 = vmul.f32 1.0, %v1617
    %v1619 = vadd.f32 %v1590, %v183
    %v1620 = vmul.f32 %v1618, %v1619
    %v1622 = vrot.slane %v133, 2
    %v1624 = vadd.f32 %v1622, %v1620
    %v1625 = vtanh.pop %v1624
    %v1627 = vrot.slane %v1618, 1
    %v1629 = vsub.f32 1.0, %v1627
    %v1630 = vmul.f32 %v1629, %v1625
    %v1631 = vmul.f32 %v1627, %v1451
    %v1632 = vadd.f32 %v1630, %v1631
    %v1634 = vlaneseq
    %v1635 = vshrl.u32 %v1634, 7
    %v1636 = vsub.s32 0, %v1635
    %v1637 = vrot.slane %v546, %v1636
    %v1640 = vlaneseq
    %v1641 = vshrl.u32 %v1640, 7
    %v1642 = vsub.s32 0, %v1641
    %v1643 = vrot.slane %v727, %v1642
    %v1646 = vlaneseq
    %v1647 = vshrl.u32 %v1646, 7
    %v1648 = vsub.s32 0, %v1647
    %v1649 = vrot.slane %v908, %v1648
    %v1652 = vlaneseq
    %v1653 = vshrl.u32 %v1652, 7
    %v1654 = vsub.s32 0, %v1653
    %v1655 = vrot.slane %v1089, %v1654
    %v1658 = vlaneseq
    %v1659 = vshrl.u32 %v1658, 7
    %v1660 = vsub.s32 0, %v1659
    %v1661 = vrot.slane %v1270, %v1660
    %v1664 = vlaneseq
    %v1665 = vshrl.u32 %v1664, 7
    %v1666 = vsub.s32 0, %v1665
    %v1667 = vrot.slane %v1451, %v1666
    %v1670 = vlaneseq
    %v1671 = vshrl.u32 %v1670, 7
    %v1672 = vsub.s32 0, %v1671
    %v1673 = vrot.slane %v1632, %v1672
    %vm1675 = vcmask 1040384
    %v1676 = vsel %vm1675, %v365, %v1637
    %vm1677 = vcmask 1041408
    %v1678 = vsel %vm1677, %v1676, %v1643
    %vm1679 = vcmask 1042432
    %v1680 = vsel %vm1679, %v1678, %v1649
    %vm1681 = vcmask 1043456
    %v1682 = vsel %vm1681, %v1680, %v1655
    %vm1683 = vcmask 1044480
    %v1684 = vsel %vm1683, %v1682, %v1661
    %vm1685 = vcmask 1045504
    %v1686 = vsel %vm1685, %v1684, %v1667
    %vm1687 = vcmask 1046528
    %v1688 = vsel %vm1687, %v1686, %v1673
    %1689 = vst [vmem:[#allocation9] sm:$0xff] %v1688
    // Predicated region
    $region30: #{tpu_custom_call.1} parent=1 // pred_check
      _
    $region31: #{tpu_custom_call.1} parent=1 // pred_check_branch
      %1691 = sbr.rel (0) target = $region33
    $region32: #{tpu_custom_call.1} parent=1 // pred_region
      %s1693 = ssub.s32 128, 128
      %1694 = vsyncadd [#allocation6], %s1693
      %s1696 = sshll.u32 [#allocation9], 4
      %s1697 = int_to_ptr.vmem [resolvable:$true] %s1696
      %1699 = dma.vmem_to_hbm [thread:$0]  %s1697, 128, %s6, [#allocation6]
    $region33: #{tpu_custom_call.1} parent=1 // pred_fallthru
      _
    // Predicated region
    $region34: #{tpu_custom_call.1} parent=1 // pred_check
      _
    $region35: #{tpu_custom_call.1} parent=1 // pred_check_branch
      %1701 = sbr.rel (0) target = $region37
    $region36: #{tpu_custom_call.1} parent=1 // pred_region
      %1702 = dma.done [#allocation6], 128
    $region37: #{tpu_custom_call.1} parent=1 // pred_fallthru
      _
    %1703 = vsyncpa [#allocation5], 1
    %1704 = vsyncpa [#allocation8], 1
    %1705 = vsyncpa [#allocation6], 1

</llo_original>
